<compile_context>
chip_gen: v7x
topology: tpu7x:2x2x1
jax: 0.10.0
libtpu: 0.0.40
codegen_flags: <defaults>
</compile_context>

<pallas_src>
import functools
import math

import jax
import jax.numpy as jnp
from jax import lax
from jax.experimental import pallas as pl
from jax.experimental.pallas import tpu as pltpu

_INV_SQRT2 = 0.7071067811865476
_SQRT_2_OVER_PI = 0.7978845608028654


def _round_up(x, m):
    return ((x + m - 1) // m) * m


def _tpu_vmem_bytes():
    """Physical VMEM per TensorCore; conservative 64 MiB (v7x) fallback."""
    try:
        info = pltpu.get_tpu_info()
    except Exception:
        return 64 * 1024 * 1024
    for name in ("vmem_capacity_bytes", "vmem_bytes", "vmem_size_bytes"):
        v = getattr(info, name, None)
        if isinstance(v, int) and v > 0:
            return v
    return 64 * 1024 * 1024


def _pick_th(H, target):
    """Largest lane-aligned (multiple-of-128) divisor of H that is <= target."""
    if H % 128 != 0:
        # Lane constraint requires the full hidden dim in one chunk in this case.
        # TODO(synk): pad H instead if E*H*2B per chunk would blow VMEM.
        return H
    target = min(max(128, (target // 128) * 128), H)
    for cand in range(target, 127, -128):
        if H % cand == 0:
            return cand
    return 128


def _pick_tm(N, target):
    """Row tile: large tiles are multiples of 256 (MXU-friendly on every gen,
    also a multiple of 128 for v5e); small tiles are multiples of 16 (bf16
    sublane packing).  Keeps >= 2 row tiles when N is large enough so the
    megacore/second-TC row sharding has work on both cores."""
    if N >= 512 and target >= N:
        target = -(-N // 2)
    tm = max(16, min(target, N))
    if tm >= 256:
        tm = max(256, (tm // 256) * 256)
    else:
        tm = _round_up(tm, 16)
    return tm


def _vmem_bytes_estimate(tm, th, E, compute_bytes, out_bytes):
    x = 2 * tm * E * compute_bytes        # double-buffered x tile
    w = 2 * 2 * E * th * compute_bytes    # double-buffered W1 + W2 chunks
    out = 2 * tm * E * out_bytes          # double-buffered output tile
    acc = tm * E * 4                      # f32 accumulator scratch
    tmp = tm * th * (4 + compute_bytes)   # GELU f32 intermediate + cast buffer
    return x + w + out + acc + tmp


def _ffn_kernel(x_ref, w1_ref, w2_ref, a_ref, b_ref, o_ref, acc_ref,
                *, use_sigmoid, approximate_gelu):
    """One (row-tile i, hidden-chunk k) grid step.

    x_ref  : (tm, E)  activation row tile (compute dtype, e.g. bf16)
    w1_ref : (E, th)  column chunk of W1  (compute dtype)
    w2_ref : (th, E)  matching row chunk of W2 (compute dtype)
    a_ref  : (1, E)   LearnedDropout A (f32)
    b_ref  : (1, E)   LearnedDropout B (f32)
    o_ref  : (tm, E)  output tile
    acc_ref: (tm, E)  f32 accumulator for y = gelu(x@W1)@W2, resident across k
    """
    k = pl.program_id(1)

    @pl.when(k == 0)
    def _init():
        acc_ref[...] = jnp.zeros_like(acc_ref)

    # First linear (chunk): (tm, E) @ (E, th) -> (tm, th), f32 accumulation.
    h = jnp.dot(x_ref[...], w1_ref[...], preferred_element_type=jnp.float32)
    if approximate_gelu:
        # tanh GELU: tanh runs on the EUP slot, hides under the MXU.
        h = 0.5 * h * (1.0 + jnp.tanh(_SQRT_2_OVER_PI * (h + 0.044715 * h * h * h)))
    else:
        # Exact (erf) GELU, matching nn.GELU() default.  GELU is applied per
        # hidden column, so chunking the hidden dim is exact.
        h = 0.5 * h * (1.0 + lax.erf(h * _INV_SQRT2))
    # Residual projection (chunk): (tm, th) @ (th, E) -> (tm, E); accumulate f32.
    # Keep the single accumulate expression so Mosaic can map it to the MXU
    # result-buffer accumulate on v7x.
    acc_ref[...] += jnp.dot(h.astype(w2_ref.dtype), w2_ref[...],
                            preferred_element_type=jnp.float32)

    @pl.when(k == pl.num_programs(1) - 1)
    def _finalize():
        y = acc_ref[...]                       # keep y in f32 through the mask
        mask = 0.5 * jnp.cos(a_ref[...] * y + b_ref[...]) + 0.5
        if use_sigmoid:                        # static (trace-time) branch
            # sigmoid(z) = 0.5*(tanh(z/2)+1): tanh goes to the EUP, avoids the
            # multi-op VALU divide of 1/(1+exp(-z)) on the finalize critical path.
            z = mask * 60.0 - 30.0
            mask = 0.5 * (jnp.tanh(0.5 * z) + 1.0)
        o_ref[...] = (y * mask).astype(o_ref.dtype)


def feedforward_pallas(x, w1, w2, A, B, *, tm=None, th=None,
                       compute_dtype=jnp.bfloat16, out_dtype=None,
                       use_sigmoid_on_dropout_mask=False,
                       approximate_gelu=False):
    """Fused FeedForward forward pass.

    x : [..., E]  activations (leading dims flattened into rows)
    w1: [E, 4E]   first Linear weight, stored (in, out), bias=False
    w2: [4E, E]   residual-projection weight, (in, out), bias=False
    A, B: [E]     LearnedDropout parameters
    tm/th: row tile / hidden chunk; None -> auto per TPU generation.
    """
    orig_shape = x.shape
    E = orig_shape[-1]
    N = math.prod(orig_shape[:-1]) if len(orig_shape) > 1 else 1
    H = w1.shape[1]
    assert w1.shape == (E, H) and w2.shape == (H, E)
    assert A.shape == (E,) and B.shape == (E,)
    if out_dtype is None:
        out_dtype = x.dtype

    compute_bytes = jnp.dtype(compute_dtype).itemsize
    out_bytes = jnp.dtype(out_dtype).itemsize

    # ---- per-generation tiling & VMEM budget ---------------------------------
    phys_vmem = _tpu_vmem_bytes()
    small_vmem = phys_vmem <= 64 * 1024 * 1024            # v7x: 64 MiB per TC
    # Leave headroom under the physical VMEM for compiler scratch/bookkeeping:
    # ~51 MiB on 64 MiB parts, ~102 MiB on 128 MiB parts.
    vmem_limit = max(32 * 1024 * 1024,
                     min(int(phys_vmem * 0.8), phys_vmem - 8 * 1024 * 1024))

    tm_target = tm if tm is not None else (512 if small_vmem else 768)
    th_target = th if th is not None else (512 if small_vmem else 1024)

    tm = _pick_tm(N, tm_target)
    th = _pick_th(H, th_target)

    # Shrink tiles until the estimated working set fits under the scoped limit.
    while _vmem_bytes_estimate(tm, th, E, compute_bytes, out_bytes) > vmem_limit:
        if tm > 256:
            tm -= 256
            continue
        new_th = _pick_th(H, th // 2)
        if new_th >= th:
            break
        th = new_th

    x2d = x.reshape(N, E).astype(compute_dtype)
    w1c = w1.astype(compute_dtype)
    w2c = w2.astype(compute_dtype)
    a2d = A.reshape(1, E).astype(jnp.float32)
    b2d = B.reshape(1, E).astype(jnp.float32)

    # No host-side padding: pl.cdiv grid with a partial final row block.  Pallas
    # masks out-of-bounds writes for the edge block; rows are independent so
    # garbage in the pad region of the edge tile cannot reach valid rows.
    grid = (pl.cdiv(N, tm), H // th)   # rows (parallel, megacore) x hidden chunks

    kernel = functools.partial(_ffn_kernel,
                               use_sigmoid=use_sigmoid_on_dropout_mask,
                               approximate_gelu=approximate_gelu)

    out2d = pl.pallas_call(
        kernel,
        out_shape=jax.ShapeDtypeStruct((N, E), out_dtype),
        grid_spec=pltpu.PrefetchScalarGridSpec(
            num_scalar_prefetch=0,
            grid=grid,
            in_specs=[
                pl.BlockSpec((tm, E), lambda i, k: (i, 0)),   # x row tile
                pl.BlockSpec((E, th), lambda i, k: (0, k)),   # W1 column chunk
                pl.BlockSpec((th, E), lambda i, k: (k, 0)),   # W2 row chunk
                pl.BlockSpec((1, E), lambda i, k: (0, 0)),    # A (tiny, VMEM)
                pl.BlockSpec((1, E), lambda i, k: (0, 0)),    # B (tiny, VMEM)
            ],
            out_specs=pl.BlockSpec((tm, E), lambda i, k: (i, 0)),
            scratch_shapes=[pltpu.VMEM((tm, E), jnp.float32)],
        ),
        compiler_params=pltpu.CompilerParams(
            dimension_semantics=("parallel", "arbitrary"),
            vmem_limit_bytes=int(vmem_limit),
        ),
    )(x2d, w1c, w2c, a2d, b2d)

    return out2d.reshape(orig_shape).astype(out_dtype)


def feedforward_reference(x, w1, w2, A, B, *, compute_dtype=jnp.bfloat16,
                          use_sigmoid_on_dropout_mask=False,
                          approximate_gelu=False):
    """Pure-JAX reference mirroring the kernel's dtype policy.

    Returns (out, y) where y is the pre-dropout projection (f32)."""
    orig_shape = x.shape
    E = orig_shape[-1]
    x2 = x.reshape(-1, E).astype(compute_dtype)
    w1c = w1.astype(compute_dtype)
    w2c = w2.astype(compute_dtype)
    h = jnp.dot(x2, w1c, preferred_element_type=jnp.float32)
    if approximate_gelu:
        h = 0.5 * h * (1.0 + jnp.tanh(_SQRT_2_OVER_PI * (h + 0.044715 * h * h * h)))
    else:
        h = 0.5 * h * (1.0 + lax.erf(h * _INV_SQRT2))
    y = jnp.dot(h.astype(compute_dtype), w2c,
                preferred_element_type=jnp.float32)
    mask = 0.5 * jnp.cos(A[None, :].astype(jnp.float32) * y
                         + B[None, :].astype(jnp.float32)) + 0.5
    if use_sigmoid_on_dropout_mask:
        mask = 1.0 / (1.0 + jnp.exp(-(mask * 60.0 - 30.0)))
    out = (y * mask).astype(x.dtype)
    return out.reshape(orig_shape), y.reshape(orig_shape)


if __name__ == "__main__":
    # Small shapes consistent with the module.  n_embed is a multiple of 128 so
    # the output last dim is lane-dense.
    batch, seq, n_embed = 2, 128, 128
    hidden = 4 * n_embed

    key = jax.random.PRNGKey(0)
    kx, k1, k2, ka, kb, ka2 = jax.random.split(key, 6)

    x = jax.random.normal(kx, (batch, seq, n_embed), dtype=jnp.float32)

    # Linear weights stored transposed as (in, out); bias=False per ModelConfig.
    w1 = (jax.random.normal(k1, (n_embed, hidden), dtype=jnp.float32)
          * (1.0 / math.sqrt(n_embed)))
    w2 = (jax.random.normal(k2, (hidden, n_embed), dtype=jnp.float32)
          * (1.0 / math.sqrt(hidden)))
    # LearnedDropout B per default config; two A variants:
    #   A_wellcond: numerically well-conditioned mask for tight kernel-vs-reference
    #               comparison (cos(A*y+B) with A~1e5 is chaotic in y).
    #   A_default : the module's default scale, N(1e5, 10).
    B = 0.02 * jax.random.normal(kb, (n_embed,), dtype=jnp.float32)
    A_wellcond = 1.0 + 0.1 * jax.random.normal(ka, (n_embed,), dtype=jnp.float32)
    A_default = 100000.0 + 10.0 * jax.random.normal(ka2, (n_embed,),
                                                    dtype=jnp.float32)

    # 1) f32 compute path, well-conditioned A.  tm=96 does not divide N=256, so
    #    this exercises the partial (ragged) final row block with no host padding;
    #    th=256 gives two hidden chunks (accumulator init/accumulate/finalize).
    out = feedforward_pallas(x, w1, w2, A_wellcond, B, tm=96, th=256,
                             compute_dtype=jnp.float32)
    jax.block_until_ready(out)
    ref, _ = feedforward_reference(x, w1, w2, A_wellcond, B,
                                   compute_dtype=jnp.float32)
    assert out.shape == x.shape and out.dtype == x.dtype
    assert jnp.allclose(out, ref, atol=2e-3, rtol=2e-3), (
        float(jnp.max(jnp.abs(out - ref))))

    # 2) bf16 compute path (the performance default).
    out = feedforward_pallas(x, w1, w2, A_wellcond, B, tm=128, th=256)
    jax.block_until_ready(out)
    ref, _ = feedforward_reference(x, w1, w2, A_wellcond, B)
    assert jnp.allclose(out, ref, atol=1e-2, rtol=1e-2), (
        float(jnp.max(jnp.abs(out - ref))))

    # 3) use_sigmoid_on_dropout_mask=True variant (tanh-form sigmoid in-kernel;
    #    sigmoid(60*m - 30) amplifies mask perturbations, so looser tolerance).
    out = feedforward_pallas(x, w1, w2, A_wellcond, B, tm=128, th=256,
                             use_sigmoid_on_dropout_mask=True)
    jax.block_until_ready(out)
    ref, _ = feedforward_reference(x, w1, w2, A_wellcond, B,
                                   use_sigmoid_on_dropout_mask=True)
    assert jnp.allclose(out, ref, atol=5e-2, rtol=5e-2), (
        float(jnp.max(jnp.abs(out - ref))))

    # 4) Auto-tiled default config with module-default A ~ N(1e5, 10).  Elementwise
    #    allclose is ill-posed (chaotic cos), so check structural invariants:
    #    output is finite and |out| <= |y| since mask lies in [0, 1].
    out = feedforward_pallas(x, w1, w2, A_default, B)
    jax.block_until_ready(out)
    _, y_ref = feedforward_reference(x, w1, w2, A_default, B)
    assert bool(jnp.all(jnp.isfinite(out)))
    assert bool(jnp.all(jnp.abs(out) <= jnp.abs(y_ref) * 1.02 + 2e-2))

    # 5) Optional tanh-approximate GELU path (numerics differ slightly from exact
    #    nn.GELU(); reference mirrors the same approximation).
    out = feedforward_pallas(x, w1, w2, A_wellcond, B, tm=128, th=256,
                             approximate_gelu=True)
    jax.block_until_ready(out)
    ref, _ = feedforward_reference(x, w1, w2, A_wellcond, B,
                                   approximate_gelu=True)
    assert jnp.allclose(out, ref, atol=1e-2, rtol=1e-2), (
        float(jnp.max(jnp.abs(out - ref))))

    print("KERNEL_OK")
</pallas_src>

<mosaic_0001>
module attributes {stable_mosaic.version = 11 : i64} {
  func.func @_ffn_kernel(%arg0: i32, %arg1: i32, %arg2: memref<96x128xf32, #tpu.memory_space<vmem>>, %arg3: memref<128x256xf32, #tpu.memory_space<vmem>>, %arg4: memref<256x128xf32, #tpu.memory_space<vmem>>, %arg5: memref<1x128xf32, #tpu.memory_space<vmem>>, %arg6: memref<1x128xf32, #tpu.memory_space<vmem>>, %arg7: memref<96x128xf32, #tpu.memory_space<vmem>>, %arg8: memref<96x128xf32, #tpu.memory_space<vmem>>) attributes {dimension_semantics = [#tpu.dimension_semantics<parallel>, #tpu.dimension_semantics<arbitrary>], iteration_bounds = array<i64: 3, 2>, scalar_prefetch = 0 : i64, scratch_operands = 1 : i64, tpu.core_type = #tpu.core_type<tc>, window_params = [{transform_indices = @transform_0, window_bounds = array<i64: 96, 128>}, {transform_indices = @transform_1, window_bounds = array<i64: 128, 256>}, {transform_indices = @transform_2, window_bounds = array<i64: 256, 128>}, {pipeline_mode = #tpu.pipeline_mode<synchronous>, transform_indices = @transform_3, window_bounds = array<i64: 1, 128>}, {pipeline_mode = #tpu.pipeline_mode<synchronous>, transform_indices = @transform_4, window_bounds = array<i64: 1, 128>}, {transform_indices = @transform_5, window_bounds = array<i64: 96, 128>}]} {
    %c0_i32 = arith.constant 0 : i32
    %0 = arith.cmpi eq, %arg1, %c0_i32 : i32
    %1 = arith.extui %0 : i1 to i32
    %c0_i32_0 = arith.constant 0 : i32
    %2 = arith.cmpi ne, %1, %c0_i32_0 : i32
    scf.if %2 {
      %cst_15 = arith.constant 0.000000e+00 : f32
      %22 = vector.broadcast %cst_15 : f32 to vector<96x128xf32>
      %c0_16 = arith.constant 0 : index
      %c0_17 = arith.constant 0 : index
      %23 = vector.load %arg8[%c0_16, %c0_17] : memref<96x128xf32, #tpu.memory_space<vmem>>, vector<96x128xf32>
      tpu.vector_store %arg8[%c0_16, %c0_17], %22 {strides = array<i32>} : memref<96x128xf32, #tpu.memory_space<vmem>>, vector<96x128xf32>,
    } else {
    }
    %c0 = arith.constant 0 : index
    %c0_1 = arith.constant 0 : index
    %3 = vector.load %arg2[%c0, %c0_1] : memref<96x128xf32, #tpu.memory_space<vmem>>, vector<96x128xf32>
    %c0_2 = arith.constant 0 : index
    %c0_3 = arith.constant 0 : index
    %4 = vector.load %arg3[%c0_2, %c0_3] : memref<128x256xf32, #tpu.memory_space<vmem>>, vector<128x256xf32>
    %cst = arith.constant dense<0.000000e+00> : vector<96x256xf32>
    %5 = tpu.matmul %3, %4, %cst {dimension_numbers = #tpu.dot_dimension_numbers<[1], [0], [0], [1], [0, 0, 1, 1], [], []>} : vector<96x128xf32>, vector<128x256xf32>, vector<96x256xf32> -> vector<96x256xf32>
    %cst_4 = arith.constant 5.000000e-01 : f32
    %6 = vector.broadcast %cst_4 : f32 to vector<96x256xf32>
    %7 = arith.mulf %6, %5 : vector<96x256xf32>
    %cst_5 = arith.constant 0.707106769 : f32
    %8 = vector.broadcast %cst_5 : f32 to vector<96x256xf32>
    %9 = arith.mulf %5, %8 : vector<96x256xf32>
    %10 = math.erf %9 : vector<96x256xf32>
    %cst_6 = arith.constant 1.000000e+00 : f32
    %11 = vector.broadcast %cst_6 : f32 to vector<96x256xf32>
    %12 = arith.addf %11, %10 : vector<96x256xf32>
    %13 = arith.mulf %7, %12 : vector<96x256xf32>
    %c0_7 = arith.constant 0 : index
    %c0_8 = arith.constant 0 : index
    %14 = vector.load %arg8[%c0_7, %c0_8] : memref<96x128xf32, #tpu.memory_space<vmem>>, vector<96x128xf32>
    %c0_9 = arith.constant 0 : index
    %c0_10 = arith.constant 0 : index
    %15 = vector.load %arg4[%c0_9, %c0_10] : memref<256x128xf32, #tpu.memory_space<vmem>>, vector<256x128xf32>
    %cst_11 = arith.constant dense<0.000000e+00> : vector<96x128xf32>
    %16 = tpu.matmul %13, %15, %cst_11 {dimension_numbers = #tpu.dot_dimension_numbers<[1], [0], [0], [1], [0, 0, 1, 1], [], []>} : vector<96x256xf32>, vector<256x128xf32>, vector<96x128xf32> -> vector<96x128xf32>
    %17 = arith.addf %14, %16 : vector<96x128xf32>
    %c0_12 = arith.constant 0 : index
    %c0_13 = arith.constant 0 : index
    %18 = vector.load %arg8[%c0_12, %c0_13] : memref<96x128xf32, #tpu.memory_space<vmem>>, vector<96x128xf32>
    tpu.vector_store %arg8[%c0_12, %c0_13], %17 {strides = array<i32>} : memref<96x128xf32, #tpu.memory_space<vmem>>, vector<96x128xf32>,
    %c1_i32 = arith.constant 1 : i32
    %19 = arith.cmpi eq, %arg1, %c1_i32 : i32
    %20 = arith.extui %19 : i1 to i32
    %c0_i32_14 = arith.constant 0 : i32
    %21 = arith.cmpi ne, %20, %c0_i32_14 : i32
    scf.if %21 {
      %c0_15 = arith.constant 0 : index
      %c0_16 = arith.constant 0 : index
      %22 = vector.load %arg8[%c0_15, %c0_16] : memref<96x128xf32, #tpu.memory_space<vmem>>, vector<96x128xf32>
      %c0_17 = arith.constant 0 : index
      %c0_18 = arith.constant 0 : index
      %23 = vector.load %arg5[%c0_17, %c0_18] : memref<1x128xf32, #tpu.memory_space<vmem>>, vector<1x128xf32>
      %24 = vector.broadcast %23 : vector<1x128xf32> to vector<96x128xf32>
      %25 = arith.mulf %24, %22 : vector<96x128xf32>
      %c0_19 = arith.constant 0 : index
      %c0_20 = arith.constant 0 : index
      %26 = vector.load %arg6[%c0_19, %c0_20] : memref<1x128xf32, #tpu.memory_space<vmem>>, vector<1x128xf32>
      %27 = vector.broadcast %26 : vector<1x128xf32> to vector<96x128xf32>
      %28 = arith.addf %25, %27 : vector<96x128xf32>
      %29 = math.cos %28 : vector<96x128xf32>
      %cst_21 = arith.constant 5.000000e-01 : f32
      %30 = vector.broadcast %cst_21 : f32 to vector<96x128xf32>
      %31 = arith.mulf %30, %29 : vector<96x128xf32>
      %cst_22 = arith.constant 5.000000e-01 : f32
      %32 = vector.broadcast %cst_22 : f32 to vector<96x128xf32>
      %33 = arith.addf %31, %32 : vector<96x128xf32>
      %34 = arith.mulf %22, %33 : vector<96x128xf32>
      %c0_23 = arith.constant 0 : index
      %c0_24 = arith.constant 0 : index
      %35 = vector.load %arg7[%c0_23, %c0_24] : memref<96x128xf32, #tpu.memory_space<vmem>>, vector<96x128xf32>
      tpu.vector_store %arg7[%c0_23, %c0_24], %34 {strides = array<i32>} : memref<96x128xf32, #tpu.memory_space<vmem>>, vector<96x128xf32>,
    } else {
    }
    return
  }
  func.func @transform_0(%arg0: i32, %arg1: i32) -> (i32, i32) {
    %c0_i32 = arith.constant 0 : i32
    %c0_i32_0 = arith.constant 0 : i32
    return %arg0, %c0_i32 : i32, i32
  }
  func.func @transform_1(%arg0: i32, %arg1: i32) -> (i32, i32) {
    %c0_i32 = arith.constant 0 : i32
    %c0_i32_0 = arith.constant 0 : i32
    return %c0_i32, %arg1 : i32, i32
  }
  func.func @transform_2(%arg0: i32, %arg1: i32) -> (i32, i32) {
    %c0_i32 = arith.constant 0 : i32
    %c0_i32_0 = arith.constant 0 : i32
    return %arg1, %c0_i32 : i32, i32
  }
  func.func @transform_3(%arg0: i32, %arg1: i32) -> (i32, i32) {
    %c0_i32 = arith.constant 0 : i32
    %c0_i32_0 = arith.constant 0 : i32
    %c0_i32_1 = arith.constant 0 : i32
    return %c0_i32, %c0_i32_0 : i32, i32
  }
  func.func @transform_4(%arg0: i32, %arg1: i32) -> (i32, i32) {
    %c0_i32 = arith.constant 0 : i32
    %c0_i32_0 = arith.constant 0 : i32
    %c0_i32_1 = arith.constant 0 : i32
    return %c0_i32, %c0_i32_0 : i32, i32
  }
  func.func @transform_5(%arg0: i32, %arg1: i32) -> (i32, i32) {
    %c0_i32 = arith.constant 0 : i32
    %c0_i32_0 = arith.constant 0 : i32
    return %arg0, %c0_i32 : i32, i32
  }
}

</mosaic_0001>

<llo_original>
// kernel: tpu_custom_call.1
$region0: #{tpu_custom_call.1}
  #allocation0 [shape = 'u32[]', space=smem, size = 0x4, offset = 0x4, fixed_abs, tag = 'smem constant byte address 0x4 - core index']
  #allocation1 [shape = 'u32[144,128]{1,0:T(1,128)}', space=vmem, size = 0x12000, scoped, tag = 'internal scratch']
  #allocation2 [shape = 'f32[96,128]{1,0:T(8,128)}', space=vmem, size = 0xc000, scoped, tag = 'scratch operand']
  %s0 = inlined_call_operand.hbm [shape: f32[256,128], index: 0, kind: input, shape index: {}]
  %s1 = inlined_call_operand.hbm [shape: f32[128,512], index: 1, kind: input, shape index: {}]
  %s2 = inlined_call_operand.hbm [shape: f32[512,128], index: 2, kind: input, shape index: {}]
  %s3 = inlined_call_operand.vmem [shape: f32[1,128], index: 3, kind: input, shape index: {}]
  %s4 = inlined_call_operand.vmem [shape: f32[1,128], index: 4, kind: input, shape index: {}]
  %s5 = inlined_call_operand.hbm [shape: f32[256,128], index: 5, kind: output, shape index: {}]
  %s6 = sld [smem:[#allocation0]]
  $region73: #{tpu_custom_call.1} parent=0
    _
  %s8 = ssub.s32 1, %s6
  %s9 = scalar_select 0, %s8, %s6
  $region1: #{tpu_custom_call.1} parent=0
    #allocation3 [shape = 'u8[98304]{0}', space=vmem, size = 0x18000, scoped, tag = 'input window, operand 0']
    #allocation4 [shape = 's32[2]{0}', space=sflag, size = 0x8, scoped, tag = 'scoped memory for tpu_custom_call.1']
    #allocation5 [shape = 's32[2]{0}', space=sflag, size = 0x8, scoped, tag = 'scoped memory for tpu_custom_call.1']
    #allocation6 [shape = 'u8[262144]{0}', space=vmem, size = 0x40000, scoped, tag = 'input window, operand 1']
    #allocation7 [shape = 's32[2]{0}', space=sflag, size = 0x8, scoped, tag = 'scoped memory for tpu_custom_call.1']
    #allocation8 [shape = 'u8[262144]{0}', space=vmem, size = 0x40000, scoped, tag = 'input window, operand 2']
    #allocation9 [shape = 'u8[98304]{0}', space=vmem, size = 0x18000, scoped, tag = 'output window, operand 0']
    %10 = vsyncpa [#allocation4], 0
    %s11 = scalar_lea.sflag [#allocation4], 1
    %12 = vsyncpa %s11, 0
    %13 = vsyncpa [#allocation7], 0
    %s14 = scalar_lea.sflag [#allocation7], 1
    %15 = vsyncpa %s14, 0
    %16 = vsyncpa [#allocation5], 0
    %s17 = scalar_lea.sflag [#allocation5], 1
    %18 = vsyncpa %s17, 0
    loop: start=0, step=1, limit=8
    $region2: #{tpu_custom_call.1} parent=1 // loop_pre_header
      _
    $region3: #{tpu_custom_call.1} parent=1 // loop_header
      %s20 = sphi 0, %s24
      %p21 = scmp.ge.s32.totalorder %s20, 8
      %s27 = sphi 0, %s39
      %s28 = sphi 0, %s35
      %s29 = sphi 0, %s27
      %s30 = sphi 0, %s28
      %s31 = sphi 0, %s29
      %s32 = sphi 0, %s30
      %s42 = sphi 0, %s44
      %s45 = sphi 0, %s42
      %s46 = sphi 0, %s45
      %s62 = sphi 0, %s46
      %s68 = sphi 0, %s70
      %s71 = sphi 0, %s68
      %s72 = sphi 0, %s71
      %s88 = sphi 0, %s72
      %s94 = sphi 0, %s96
      %s97 = sphi 0, %s94
      %s98 = sphi 0, %s97
      %s114 = sphi 0, %s98
      %s118 = sphi 0, %s118
      %s120 = sphi 0, %s118
      %s121 = sphi 0, %s120
      %s135 = sphi 0, %s121
      %s139 = sphi 0, %s139
      %s141 = sphi 0, %s139
      %s142 = sphi 0, %s141
      %s156 = sphi 0, %s142
      %s162 = sphi 0, %s164
      %s165 = sphi 0, %s162
      %s166 = sphi 0, %s165
      %s182 = sphi 0, %s166
    $region4: #{tpu_custom_call.1} parent=1 // loop_header_branch
      %23 = sbr.rel (%p21) target = $region8
    $region5: #{tpu_custom_call.1} parent=1 // loop_body
      %s25 = ssub.s32 %s20, 1
      %s26 = ssub.s32 %s20, 2
      %s33 = sadd.s32 1, %s28
      %p34 = scmp.ge.s32.totalorder %s33, 2
      %s35 = scalar_select %p34, 0, %s33
      %s36 = sadd.s32 1, %s27
      %s37 = scalar_select %p34, %s36, %s27
      %p38 = scmp.ge.s32.totalorder %s37, 3
      %s39 = scalar_select %p38, 0, %s37
      %s40 = ssub.s32 %s27, %s39
      %p41 = scmp.eq.s32.totalorder %s40, 0
      %s43 = sadd.s32 %s42, 1
      %s44 = scalar_select %p41, %s42, %s43
      %p47 = pneg %p41
      %p48 = scmp.eq.s32.totalorder %s20, 5
      %p49 = por %p47, %p48
      %p50 = scmp.ne.s32.totalorder %s42, %s45
      %p51 = scmp.eq.s32.totalorder %s20, 0
      %p52 = por %p50, %p51
      %p53 = scmp.ne.s32.totalorder %s42, %s45
      %p54 = scmp.eq.s32.totalorder %s25, 5
      %p55 = por %p53, %p54
      %p56 = scmp.ne.s32.totalorder %s45, %s46
      %p57 = scmp.eq.s32.totalorder %s25, 0
      %p58 = por %p56, %p57
      %p59 = scmp.ne.s32.totalorder %s45, %s46
      %p60 = scmp.eq.s32.totalorder %s26, 5
      %p61 = por %p59, %p60
      %p63 = scmp.ne.s32.totalorder %s46, %s62
      %p64 = scmp.eq.s32.totalorder %s26, 0
      %p65 = por %p63, %p64
      %s66 = ssub.s32 %s28, %s35
      %p67 = scmp.eq.s32.totalorder %s66, 0
      %s69 = sadd.s32 %s68, 1
      %s70 = scalar_select %p67, %s68, %s69
      %p73 = pneg %p67
      %p74 = scmp.eq.s32.totalorder %s20, 5
      %p75 = por %p73, %p74
      %p76 = scmp.ne.s32.totalorder %s68, %s71
      %p77 = scmp.eq.s32.totalorder %s20, 0
      %p78 = por %p76, %p77
      %p79 = scmp.ne.s32.totalorder %s68, %s71
      %p80 = scmp.eq.s32.totalorder %s25, 5
      %p81 = por %p79, %p80
      %p82 = scmp.ne.s32.totalorder %s71, %s72
      %p83 = scmp.eq.s32.totalorder %s25, 0
      %p84 = por %p82, %p83
      %p85 = scmp.ne.s32.totalorder %s71, %s72
      %p86 = scmp.eq.s32.totalorder %s26, 5
      %p87 = por %p85, %p86
      %p89 = scmp.ne.s32.totalorder %s72, %s88
      %p90 = scmp.eq.s32.totalorder %s26, 0
      %p91 = por %p89, %p90
      %s92 = ssub.s32 %s28, %s35
      %p93 = scmp.eq.s32.totalorder %s92, 0
      %s95 = sadd.s32 %s94, 1
      %s96 = scalar_select %p93, %s94, %s95
      %p99 = pneg %p93
      %p100 = scmp.eq.s32.totalorder %s20, 5
      %p101 = por %p99, %p100
      %p102 = scmp.ne.s32.totalorder %s94, %s97
      %p103 = scmp.eq.s32.totalorder %s20, 0
      %p104 = por %p102, %p103
      %p105 = scmp.ne.s32.totalorder %s94, %s97
      %p106 = scmp.eq.s32.totalorder %s25, 5
      %p107 = por %p105, %p106
      %p108 = scmp.ne.s32.totalorder %s97, %s98
      %p109 = scmp.eq.s32.totalorder %s25, 0
      %p110 = por %p108, %p109
      %p111 = scmp.ne.s32.totalorder %s97, %s98
      %p112 = scmp.eq.s32.totalorder %s26, 5
      %p113 = por %p111, %p112
      %p115 = scmp.ne.s32.totalorder %s98, %s114
      %p116 = scmp.eq.s32.totalorder %s26, 0
      %p117 = por %p115, %p116
      %s119 = sadd.s32 %s118, 1
      %p122 = scmp.eq.s32.totalorder %s20, 5
      %p123 = scmp.ne.s32.totalorder %s118, %s120
      %p124 = scmp.eq.s32.totalorder %s20, 0
      %p125 = por %p123, %p124
      %p126 = scmp.ne.s32.totalorder %s118, %s120
      %p127 = scmp.eq.s32.totalorder %s25, 5
      %p128 = por %p126, %p127
      %p129 = scmp.ne.s32.totalorder %s120, %s121
      %p130 = scmp.eq.s32.totalorder %s25, 0
      %p131 = por %p129, %p130
      %p132 = scmp.ne.s32.totalorder %s120, %s121
      %p133 = scmp.eq.s32.totalorder %s26, 5
      %p134 = por %p132, %p133
      %p136 = scmp.ne.s32.totalorder %s121, %s135
      %p137 = scmp.eq.s32.totalorder %s26, 0
      %p138 = por %p136, %p137
      %s140 = sadd.s32 %s139, 1
      %p143 = scmp.eq.s32.totalorder %s20, 5
      %p144 = scmp.ne.s32.totalorder %s139, %s141
      %p145 = scmp.eq.s32.totalorder %s20, 0
      %p146 = por %p144, %p145
      %p147 = scmp.ne.s32.totalorder %s139, %s141
      %p148 = scmp.eq.s32.totalorder %s25, 5
      %p149 = por %p147, %p148
      %p150 = scmp.ne.s32.totalorder %s141, %s142
      %p151 = scmp.eq.s32.totalorder %s25, 0
      %p152 = por %p150, %p151
      %p153 = scmp.ne.s32.totalorder %s141, %s142
      %p154 = scmp.eq.s32.totalorder %s26, 5
      %p155 = por %p153, %p154
      %p157 = scmp.ne.s32.totalorder %s142, %s156
      %p158 = scmp.eq.s32.totalorder %s26, 0
      %p159 = por %p157, %p158
      %s160 = ssub.s32 %s27, %s39
      %p161 = scmp.eq.s32.totalorder %s160, 0
      %s163 = sadd.s32 %s162, 1
      %s164 = scalar_select %p161, %s162, %s163
      %p167 = pneg %p161
      %p168 = scmp.eq.s32.totalorder %s20, 5
      %p169 = por %p167, %p168
      %p170 = scmp.ne.s32.totalorder %s162, %s165
      %p171 = scmp.eq.s32.totalorder %s20, 0
      %p172 = por %p170, %p171
      %p173 = scmp.ne.s32.totalorder %s162, %s165
      %p174 = scmp.eq.s32.totalorder %s25, 5
      %p175 = por %p173, %p174
      %p176 = scmp.ne.s32.totalorder %s165, %s166
      %p177 = scmp.eq.s32.totalorder %s25, 0
      %p178 = por %p176, %p177
      %p179 = scmp.ne.s32.totalorder %s165, %s166
      %p180 = scmp.eq.s32.totalorder %s26, 5
      %p181 = por %p179, %p180
      %p183 = scmp.ne.s32.totalorder %s166, %s182
      %p184 = scmp.eq.s32.totalorder %s26, 0
      %p185 = por %p183, %p184
      %p186 = scmp.le.s32.totalorder 1, %s20
      %p187 = scmp.lt.s32.totalorder %s20, 7
      %p188 = pnand %p186, %p187
      %p189 = pneg %p188
      // Predicated region
      $region9: #{tpu_custom_call.1} parent=5 // pred_check
        _
      $region10: #{tpu_custom_call.1} parent=5 // pred_check_branch
        %191 = sbr.rel (%p188) target = $region12
      $region11: #{tpu_custom_call.1} parent=5 // pred_region
        %s192 = ssub.s32 %s20, 1
        // Predicated region
        $region13: #{tpu_custom_call.1} parent=11 // pred_check
          %p193 = pneg %p131
        $region14: #{tpu_custom_call.1} parent=11 // pred_check_branch
          %195 = sbr.rel (%p193) target = $region16
        $region15: #{tpu_custom_call.1} parent=11 // pred_region
          _
        $region16: #{tpu_custom_call.1} parent=11 // pred_fallthru
          _
        // Predicated region
        $region17: #{tpu_custom_call.1} parent=11 // pred_check
          %p196 = pneg %p152
        $region18: #{tpu_custom_call.1} parent=11 // pred_check_branch
          %198 = sbr.rel (%p196) target = $region20
        $region19: #{tpu_custom_call.1} parent=11 // pred_region
          _
        $region20: #{tpu_custom_call.1} parent=11 // pred_fallthru
          _
      $region12: #{tpu_custom_call.1} parent=5 // pred_fallthru
        _
      %p199 = scmp.lt.s32.totalorder %s20, 6
      // Predicated region
      $region21: #{tpu_custom_call.1} parent=5 // pred_check
        %p200 = pneg %p199
      $region22: #{tpu_custom_call.1} parent=5 // pred_check_branch
        %202 = sbr.rel (%p200) target = $region24
      $region23: #{tpu_custom_call.1} parent=5 // pred_region
        // Predicated region
        $region25: #{tpu_custom_call.1} parent=23 // pred_check
          %p203 = pneg %p52
        $region26: #{tpu_custom_call.1} parent=23 // pred_check_branch
          %205 = sbr.rel (%p203) target = $region28
        $region27: #{tpu_custom_call.1} parent=23 // pred_region
          %s206 = sand.u32 %s42, 1
          %s207 = scalar_lea.sflag [#allocation4], %s206
          %s208 = sand.u32 %s42, 1
          %s209 = smul.addr %s208, 96
          %s210 = scalar_lea.vmem [#allocation3], %s209
          %s211 = smul.u32 12, %s27
          %s212 = ssub.s32 32, %s211
          %p213 = scmp.lt.s32.totalorder %s212, 12
          %s214 = scalar_select %p213, %s212, 12
          %s215 = smul.u32 128, %s214
          %s217 = ssub.s32 1536, %s215
          %218 = vsyncadd %s207, %s217
          %p219 = scmp.ne.s32.totalorder 0, %s215
          %s220 = smul.addr %s211, 128
          %s221 = scalar_lea.hbm %s0, %s220
          %s222 = smul.u32 8, %s214
          %s223 = sshll.u32 %s210, 4
          %s224 = int_to_ptr.vmem [resolvable:$true] %s223
          %s225 = sshll.u32 %s222, 4
          %229 = dma.hbm_to_vmem [thread:$0]  (%p219), %s221, %s225, %s224, %s207, 128, 128, 8
        $region28: #{tpu_custom_call.1} parent=23 // pred_fallthru
          _
        // Predicated region
        $region29: #{tpu_custom_call.1} parent=23 // pred_check
          %p230 = pneg %p78
        $region30: #{tpu_custom_call.1} parent=23 // pred_check_branch
          %232 = sbr.rel (%p230) target = $region32
        $region31: #{tpu_custom_call.1} parent=23 // pred_region
          %s233 = sand.u32 %s20, 1
          %s234 = scalar_lea.sflag [#allocation7], %s233
          %s235 = sand.u32 %s68, 1
          %s236 = smul.addr %s235, 256
          %s237 = scalar_lea.vmem [#allocation6], %s236
          %s238 = smul.u32 2, %s28
          %s240 = ssub.s32 4096, 4096
          %241 = vsyncadd %s234, %s240
          %s242 = smul.addr %s238, 128
          %s243 = scalar_lea.hbm %s1, %s242
          %s244 = sshll.u32 %s237, 4
          %s245 = int_to_ptr.vmem [resolvable:$true] %s244
          %250 = dma.hbm_to_vmem [thread:$0]  %s243, 4096, %s245, %s234, 512, 256, 16
        $region32: #{tpu_custom_call.1} parent=23 // pred_fallthru
          _
        // Predicated region
        $region33: #{tpu_custom_call.1} parent=23 // pred_check
          %p251 = pneg %p104
        $region34: #{tpu_custom_call.1} parent=23 // pred_check_branch
          %253 = sbr.rel (%p251) target = $region36
        $region35: #{tpu_custom_call.1} parent=23 // pred_region
          %s254 = sand.u32 %s20, 1
          %s255 = scalar_lea.sflag [#allocation7], %s254
          %s256 = sand.u32 %s94, 1
          %s257 = smul.addr %s256, 256
          %s258 = scalar_lea.vmem [#allocation8], %s257
          %s259 = smul.u32 32, %s28
          %s261 = ssub.s32 4096, 4096
          %262 = vsyncadd %s255, %s261
          %s263 = smul.addr %s259, 128
          %s264 = scalar_lea.hbm %s2, %s263
          %s265 = sshll.u32 %s258, 4
          %s266 = int_to_ptr.vmem [resolvable:$true] %s265
          %271 = dma.hbm_to_vmem [thread:$0]  %s264, 4096, %s266, %s255, 128, 128, 8
        $region36: #{tpu_custom_call.1} parent=23 // pred_fallthru
          _
      $region24: #{tpu_custom_call.1} parent=5 // pred_fallthru
        _
      %p272 = scmp.le.s32.totalorder 1, %s20
      %p273 = scmp.lt.s32.totalorder %s20, 7
      %p274 = pnand %p272, %p273
      %p275 = pneg %p274
      // Predicated region
      $region37: #{tpu_custom_call.1} parent=5 // pred_check
        _
      $region38: #{tpu_custom_call.1} parent=5 // pred_check_branch
        %277 = sbr.rel (%p274) target = $region40
      $region39: #{tpu_custom_call.1} parent=5 // pred_region
        %s278 = ssub.s32 %s20, 1
        %s279 = sand.u32 %s45, 1
        %s280 = scalar_lea.sflag [#allocation4], %s279
        %s281 = sand.u32 %s45, 1
        %s282 = smul.addr %s281, 96
        %s283 = scalar_lea.vmem [#allocation3], %s282
        // Predicated region
        $region41: #{tpu_custom_call.1} parent=39 // pred_check
          %p284 = pneg %p58
        $region42: #{tpu_custom_call.1} parent=39 // pred_check_branch
          %286 = sbr.rel (%p284) target = $region44
        $region43: #{tpu_custom_call.1} parent=39 // pred_region
          %287 = dma.done %s280, 1536
        $region44: #{tpu_custom_call.1} parent=39 // pred_fallthru
          _
        %s288 = sand.u32 %s25, 1
        %s289 = scalar_lea.sflag [#allocation7], %s288
        %s290 = sand.u32 %s71, 1
        %s291 = smul.addr %s290, 256
        %s292 = scalar_lea.vmem [#allocation6], %s291
        // Predicated region
        $region45: #{tpu_custom_call.1} parent=39 // pred_check
          %p293 = pneg %p84
        $region46: #{tpu_custom_call.1} parent=39 // pred_check_branch
          %295 = sbr.rel (%p293) target = $region48
        $region47: #{tpu_custom_call.1} parent=39 // pred_region
          %296 = dma.done %s289, 4096
        $region48: #{tpu_custom_call.1} parent=39 // pred_fallthru
          _
        %s297 = sand.u32 %s25, 1
        %s298 = scalar_lea.sflag [#allocation7], %s297
        %s299 = sand.u32 %s97, 1
        %s300 = smul.addr %s299, 256
        %s301 = scalar_lea.vmem [#allocation8], %s300
        // Predicated region
        $region49: #{tpu_custom_call.1} parent=39 // pred_check
          %p302 = pneg %p110
        $region50: #{tpu_custom_call.1} parent=39 // pred_check_branch
          %304 = sbr.rel (%p302) target = $region52
        $region51: #{tpu_custom_call.1} parent=39 // pred_region
          %305 = dma.done %s298, 4096
        $region52: #{tpu_custom_call.1} parent=39 // pred_fallthru
          _
        %s306 = sand.u32 %s45, 1
        %s307 = scalar_lea.sflag [#allocation4], %s306
        %s308 = sand.u32 %s45, 1
        %s309 = smul.addr %s308, 96
        %s310 = scalar_lea.vmem [#allocation3], %s309
        %p311 = pneg %p58
        %p312 = pneg %p55
        %s313 = sand.u32 %s25, 1
        %s314 = scalar_lea.sflag [#allocation7], %s313
        %s315 = sand.u32 %s71, 1
        %s316 = smul.addr %s315, 256
        %s317 = scalar_lea.vmem [#allocation6], %s316
        %p318 = pneg %p84
        %p319 = pneg %p81
        %s320 = sand.u32 %s25, 1
        %s321 = scalar_lea.sflag [#allocation7], %s320
        %s322 = sand.u32 %s97, 1
        %s323 = smul.addr %s322, 256
        %s324 = scalar_lea.vmem [#allocation8], %s323
        %p325 = pneg %p110
        %p326 = pneg %p107
        %p327 = pneg %p131
        %p328 = pneg %p128
        %p329 = pneg %p152
        %p330 = pneg %p149
        %p331 = pneg %p178
        %p332 = pneg %p175
        %s333 = sand.u32 %s165, 1
        %s334 = scalar_lea.sflag [#allocation5], %s333
        %s335 = sand.u32 %s165, 1
        %s336 = smul.addr %s335, 96
        %s337 = scalar_lea.vmem [#allocation9], %s336
        %s338 = smul.u32 12, %s29
        %s339 = ssub.s32 32, %s338
        %p340 = scmp.lt.s32.totalorder %s339, 12
        %s341 = scalar_select %p340, %s339, 12
        %s342 = smul.u32 128, %s341
        %s343 = smul.u32 2, %s30
        %s344 = smul.u32 32, %s30
        %s345 = smul.u32 12, %s29
        %s346 = ssub.s32 32, %s345
        %p347 = scmp.lt.s32.totalorder %s346, 12
        %s348 = scalar_select %p347, %s346, 12
        %s349 = smul.u32 128, %s348
        %p350 = scmp.eq.s32.totalorder %s30, 0
        // Predicated region
        $region53: #{tpu_custom_call.1} parent=39 // pred_check
          %p351 = pneg %p350
        $region54: #{tpu_custom_call.1} parent=39 // pred_check_branch
          %353 = sbr.rel (%p351) target = $region56
        $region55: #{tpu_custom_call.1} parent=39 // pred_region
          %354 = vst [vmem:[#allocation2] sm:$0xff] 0.0
          %355 = vst [vmem:[#allocation2 + $0x8] sm:$0xff] 0.0
          %356 = vst [vmem:[#allocation2 + $0x10] sm:$0xff] 0.0
          %357 = vst [vmem:[#allocation2 + $0x18] sm:$0xff] 0.0
          %358 = vst [vmem:[#allocation2 + $0x20] sm:$0xff] 0.0
          %359 = vst [vmem:[#allocation2 + $0x28] sm:$0xff] 0.0
          %360 = vst [vmem:[#allocation2 + $0x30] sm:$0xff] 0.0
          %361 = vst [vmem:[#allocation2 + $0x38] sm:$0xff] 0.0
          %362 = vst [vmem:[#allocation2 + $0x40] sm:$0xff] 0.0
          %363 = vst [vmem:[#allocation2 + $0x48] sm:$0xff] 0.0
          %364 = vst [vmem:[#allocation2 + $0x50] sm:$0xff] 0.0
          %365 = vst [vmem:[#allocation2 + $0x58] sm:$0xff] 0.0
        $region56: #{tpu_custom_call.1} parent=39 // pred_fallthru
          _
        %v366 = vld [vmem:[%s283] sm:$0xff]
        %v367 = vld [vmem:[%s283 + $0x8] sm:$0xff]
        %v368 = vld [vmem:[%s283 + $0x10] sm:$0xff]
        %v369 = vld [vmem:[%s283 + $0x18] sm:$0xff]
        %v370 = vld [vmem:[%s283 + $0x20] sm:$0xff]
        %v371 = vld [vmem:[%s283 + $0x28] sm:$0xff]
        %v372 = vld [vmem:[%s283 + $0x30] sm:$0xff]
        %v373 = vld [vmem:[%s283 + $0x38] sm:$0xff]
        %v374 = vld [vmem:[%s283 + $0x40] sm:$0xff]
        %v375 = vld [vmem:[%s283 + $0x48] sm:$0xff]
        %v376 = vld [vmem:[%s283 + $0x50] sm:$0xff]
        %v377 = vld [vmem:[%s283 + $0x58] sm:$0xff]
        %v378 = vld [vmem:[%s292] sm:$0xff]
        %v379 = vld [vmem:[%s292 + $0x8] sm:$0xff]
        %v380 = vld [vmem:[%s292 + $0x10] sm:$0xff]
        %v381 = vld [vmem:[%s292 + $0x18] sm:$0xff]
        %v382 = vld [vmem:[%s292 + $0x20] sm:$0xff]
        %v383 = vld [vmem:[%s292 + $0x28] sm:$0xff]
        %v384 = vld [vmem:[%s292 + $0x30] sm:$0xff]
        %v385 = vld [vmem:[%s292 + $0x38] sm:$0xff]
        %v386 = vld [vmem:[%s292 + $0x40] sm:$0xff]
        %v387 = vld [vmem:[%s292 + $0x48] sm:$0xff]
        %v388 = vld [vmem:[%s292 + $0x50] sm:$0xff]
        %v389 = vld [vmem:[%s292 + $0x58] sm:$0xff]
        %v390 = vld [vmem:[%s292 + $0x60] sm:$0xff]
        %v391 = vld [vmem:[%s292 + $0x68] sm:$0xff]
        %v392 = vld [vmem:[%s292 + $0x70] sm:$0xff]
        %v393 = vld [vmem:[%s292 + $0x78] sm:$0xff]
        %v394 = vld [vmem:[%s292 + $0x80] sm:$0xff]
        %v395 = vld [vmem:[%s292 + $0x88] sm:$0xff]
        %v396 = vld [vmem:[%s292 + $0x90] sm:$0xff]
        %v397 = vld [vmem:[%s292 + $0x98] sm:$0xff]
        %v398 = vld [vmem:[%s292 + $0xa0] sm:$0xff]
        %v399 = vld [vmem:[%s292 + $0xa8] sm:$0xff]
        %v400 = vld [vmem:[%s292 + $0xb0] sm:$0xff]
        %v401 = vld [vmem:[%s292 + $0xb8] sm:$0xff]
        %v402 = vld [vmem:[%s292 + $0xc0] sm:$0xff]
        %v403 = vld [vmem:[%s292 + $0xc8] sm:$0xff]
        %v404 = vld [vmem:[%s292 + $0xd0] sm:$0xff]
        %v405 = vld [vmem:[%s292 + $0xd8] sm:$0xff]
        %v406 = vld [vmem:[%s292 + $0xe0] sm:$0xff]
        %v407 = vld [vmem:[%s292 + $0xe8] sm:$0xff]
        %v408 = vld [vmem:[%s292 + $0xf0] sm:$0xff]
        %v409 = vld [vmem:[%s292 + $0xf8] sm:$0xff]
        %410 = vmatprep.subr.mxu0 %v379
        %411 = vmatpush1.msra.mxu0 %v378
        %412 = vmatprep.subr.mxu0 %v381
        %413 = vmatpush1.msra.mxu0 %v380
        %414 = vmatprep.subr.mxu0 %v383
        %415 = vmatpush1.msra.mxu0 %v382
        %416 = vmatprep.subr.mxu0 %v385
        %417 = vmatpush1.msra.mxu0 %v384
        %418 = vmatprep.subr.mxu0 %v387
        %419 = vmatpush1.msra.mxu0 %v386
        %420 = vmatprep.subr.mxu0 %v389
        %421 = vmatpush1.msra.mxu0 %v388
        %422 = vmatprep.subr.mxu0 %v391
        %423 = vmatpush1.msra.mxu0 %v390
        %424 = vmatprep.subr.mxu0 %v393
        %425 = vmatpush1.msra.mxu0 %v392
        %426 = vmatprep.subr.mxu0 %v395
        %427 = vmatpush1.msra.mxu0 %v394
        %428 = vmatprep.subr.mxu0 %v397
        %429 = vmatpush1.msra.mxu0 %v396
        %430 = vmatprep.subr.mxu0 %v399
        %431 = vmatpush1.msra.mxu0 %v398
        %432 = vmatprep.subr.mxu0 %v401
        %433 = vmatpush1.msra.mxu0 %v400
        %434 = vmatprep.subr.mxu0 %v403
        %435 = vmatpush1.msra.mxu0 %v402
        %436 = vmatprep.subr.mxu0 %v405
        %437 = vmatpush1.msra.mxu0 %v404
        %438 = vmatprep.subr.mxu0 %v407
        %439 = vmatpush1.msra.mxu0 %v406
        %440 = vmatprep.subr.mxu0 %v409
        %441 = vmatpush1.msra.mxu0 %v408
        %442 = vmatprep.subr.mxu0 0.0
        %443 = vmatpush1.msra.mxu0 0.0
        %444 = vmatprep.subr.mxu0 0.0
        %445 = vmatpush1.msra.mxu0 0.0
        %446 = vmatprep.subr.mxu0 0.0
        %447 = vmatpush1.msra.mxu0 0.0
        %448 = vmatprep.subr.mxu0 0.0
        %449 = vmatpush1.msra.mxu0 0.0
        %450 = vmatprep.subr.mxu0 0.0
        %451 = vmatpush1.msra.mxu0 0.0
        %452 = vmatprep.subr.mxu0 0.0
        %453 = vmatpush1.msra.mxu0 0.0
        %454 = vmatprep.subr.mxu0 0.0
        %455 = vmatpush1.msra.mxu0 0.0
        %456 = vmatprep.subr.mxu0 0.0
        %457 = vmatpush1.msra.mxu0 0.0
        %458 = vmatprep.subr.mxu0 0.0
        %459 = vmatpush1.msra.mxu0 0.0
        %460 = vmatprep.subr.mxu0 0.0
        %461 = vmatpush1.msra.mxu0 0.0
        %462 = vmatprep.subr.mxu0 0.0
        %463 = vmatpush1.msra.mxu0 0.0
        %464 = vmatprep.subr.mxu0 0.0
        %465 = vmatpush1.msra.mxu0 0.0
        %466 = vmatprep.subr.mxu0 0.0
        %467 = vmatpush1.msra.mxu0 0.0
        %468 = vmatprep.subr.mxu0 0.0
        %469 = vmatpush1.msra.mxu0 0.0
        %470 = vmatprep.subr.mxu0 0.0
        %471 = vmatpush1.msra.mxu0 0.0
        %472 = vmatprep.subr.mxu0 0.0
        %473 = vmatpush1.msra.mxu0 0.0
        %474 = vmatprep.mubr.f32.mxu0 0.0
        %475 = vmatmul.mubr.f32.gmra.mrb[0].mxu0 %v366
        %v476 = vpop.f32.mrb[0].mxu0
        %v477 = vadd.f32 0.0, %v476
        %v478 = vpop.f32.mrb[0].mxu0
        %v479 = vadd.f32 0.0, %v478
        %480 = vmatprep.mubr.f32.mxu0 0.0
        %481 = vmatmul.mubr.f32.gmra.mrb[0].mxu0 %v367
        %v482 = vpop.f32.mrb[0].mxu0
        %v483 = vadd.f32 0.0, %v482
        %v484 = vpop.f32.mrb[0].mxu0
        %v485 = vadd.f32 0.0, %v484
        %486 = vmatprep.mubr.f32.mxu0 0.0
        %487 = vmatmul.mubr.f32.gmra.mrb[0].mxu0 %v368
        %v488 = vpop.f32.mrb[0].mxu0
        %v489 = vadd.f32 0.0, %v488
        %v490 = vpop.f32.mrb[0].mxu0
        %v491 = vadd.f32 0.0, %v490
        %492 = vmatprep.mubr.f32.mxu0 0.0
        %493 = vmatmul.mubr.f32.gmra.mrb[0].mxu0 %v369
        %v494 = vpop.f32.mrb[0].mxu0
        %v495 = vadd.f32 0.0, %v494
        %v496 = vpop.f32.mrb[0].mxu0
        %v497 = vadd.f32 0.0, %v496
        %498 = vmatprep.mubr.f32.mxu0 0.0
        %499 = vmatmul.mubr.f32.gmra.mrb[0].mxu0 %v370
        %v500 = vpop.f32.mrb[0].mxu0
        %v501 = vadd.f32 0.0, %v500
        %v502 = vpop.f32.mrb[0].mxu0
        %v503 = vadd.f32 0.0, %v502
        %504 = vmatprep.mubr.f32.mxu0 0.0
        %505 = vmatmul.mubr.f32.gmra.mrb[0].mxu0 %v371
        %v506 = vpop.f32.mrb[0].mxu0
        %v507 = vadd.f32 0.0, %v506
        %v508 = vpop.f32.mrb[0].mxu0
        %v509 = vadd.f32 0.0, %v508
        %510 = vmatprep.mubr.f32.mxu0 0.0
        %511 = vmatmul.mubr.f32.gmra.mrb[0].mxu0 %v372
        %v512 = vpop.f32.mrb[0].mxu0
        %v513 = vadd.f32 0.0, %v512
        %v514 = vpop.f32.mrb[0].mxu0
        %v515 = vadd.f32 0.0, %v514
        %516 = vmatprep.mubr.f32.mxu0 0.0
        %517 = vmatmul.mubr.f32.gmra.mrb[0].mxu0 %v373
        %v518 = vpop.f32.mrb[0].mxu0
        %v519 = vadd.f32 0.0, %v518
        %v520 = vpop.f32.mrb[0].mxu0
        %v521 = vadd.f32 0.0, %v520
        %522 = vmatprep.mubr.f32.mxu0 0.0
        %523 = vmatmul.mubr.f32.gmra.mrb[0].mxu0 %v374
        %v524 = vpop.f32.mrb[0].mxu0
        %v525 = vadd.f32 0.0, %v524
        %v526 = vpop.f32.mrb[0].mxu0
        %v527 = vadd.f32 0.0, %v526
        %528 = vmatprep.mubr.f32.mxu0 0.0
        %529 = vmatmul.mubr.f32.gmra.mrb[0].mxu0 %v375
        %v530 = vpop.f32.mrb[0].mxu0
        %v531 = vadd.f32 0.0, %v530
        %v532 = vpop.f32.mrb[0].mxu0
        %v533 = vadd.f32 0.0, %v532
        %534 = vmatprep.mubr.f32.mxu0 0.0
        %535 = vmatmul.mubr.f32.gmra.mrb[0].mxu0 %v376
        %v536 = vpop.f32.mrb[0].mxu0
        %v537 = vadd.f32 0.0, %v536
        %v538 = vpop.f32.mrb[0].mxu0
        %v539 = vadd.f32 0.0, %v538
        %540 = vmatprep.mubr.f32.mxu0 0.0
        %541 = vmatmul.mubr.f32.gmra.mrb[0].mxu0 %v377
        %v542 = vpop.f32.mrb[0].mxu0
        %v543 = vadd.f32 0.0, %v542
        %v544 = vpop.f32.mrb[0].mxu0
        %v545 = vadd.f32 0.0, %v544
        %546 = vdwg.mxu0
        %v547 = vmul.f32 %v477, 0.5
        %v548 = vmul.f32 %v479, 0.5
        %v549 = vmul.f32 %v483, 0.5
        %v550 = vmul.f32 %v485, 0.5
        %v551 = vmul.f32 %v489, 0.5
        %v552 = vmul.f32 %v491, 0.5
        %v553 = vmul.f32 %v495, 0.5
        %v554 = vmul.f32 %v497, 0.5
        %v555 = vmul.f32 %v501, 0.5
        %v556 = vmul.f32 %v503, 0.5
        %v557 = vmul.f32 %v507, 0.5
        %v558 = vmul.f32 %v509, 0.5
        %v559 = vmul.f32 %v513, 0.5
        %v560 = vmul.f32 %v515, 0.5
        %v561 = vmul.f32 %v519, 0.5
        %v562 = vmul.f32 %v521, 0.5
        %v563 = vmul.f32 %v525, 0.5
        %v564 = vmul.f32 %v527, 0.5
        %v565 = vmul.f32 %v531, 0.5
        %v566 = vmul.f32 %v533, 0.5
        %v567 = vmul.f32 %v537, 0.5
        %v568 = vmul.f32 %v539, 0.5
        %v569 = vmul.f32 %v543, 0.5
        %v570 = vmul.f32 %v545, 0.5
        %v571 = vmul.f32 %v477, 0.70710677
        %v572 = vmul.f32 %v479, 0.70710677
        %v573 = vmul.f32 %v483, 0.70710677
        %v574 = vmul.f32 %v485, 0.70710677
        %v575 = vmul.f32 %v489, 0.70710677
        %v576 = vmul.f32 %v491, 0.70710677
        %v577 = vmul.f32 %v495, 0.70710677
        %v578 = vmul.f32 %v497, 0.70710677
        %v579 = vmul.f32 %v501, 0.70710677
        %v580 = vmul.f32 %v503, 0.70710677
        %v581 = vmul.f32 %v507, 0.70710677
        %v582 = vmul.f32 %v509, 0.70710677
        %v583 = vmul.f32 %v513, 0.70710677
        %v584 = vmul.f32 %v515, 0.70710677
        %v585 = vmul.f32 %v519, 0.70710677
        %v586 = vmul.f32 %v521, 0.70710677
        %v587 = vmul.f32 %v525, 0.70710677
        %v588 = vmul.f32 %v527, 0.70710677
        %v589 = vmul.f32 %v531, 0.70710677
        %v590 = vmul.f32 %v533, 0.70710677
        %v591 = vmul.f32 %v537, 0.70710677
        %v592 = vmul.f32 %v539, 0.70710677
        %v593 = vmul.f32 %v543, 0.70710677
        %v594 = vmul.f32 %v545, 0.70710677
        %v595 = verf.f32.pop %v571
        %v596 = verf.f32.pop %v572
        %v597 = verf.f32.pop %v573
        %v598 = verf.f32.pop %v574
        %v599 = verf.f32.pop %v575
        %v600 = verf.f32.pop %v576
        %v601 = verf.f32.pop %v577
        %v602 = verf.f32.pop %v578
        %v603 = verf.f32.pop %v579
        %v604 = verf.f32.pop %v580
        %v605 = verf.f32.pop %v581
        %v606 = verf.f32.pop %v582
        %v607 = verf.f32.pop %v583
        %v608 = verf.f32.pop %v584
        %v609 = verf.f32.pop %v585
        %v610 = verf.f32.pop %v586
        %v611 = verf.f32.pop %v587
        %v612 = verf.f32.pop %v588
        %v613 = verf.f32.pop %v589
        %v614 = verf.f32.pop %v590
        %v615 = verf.f32.pop %v591
        %v616 = verf.f32.pop %v592
        %v617 = verf.f32.pop %v593
        %v618 = verf.f32.pop %v594
        %v619 = vadd.f32 %v595, 1.0
        %v620 = vadd.f32 %v596, 1.0
        %v621 = vadd.f32 %v597, 1.0
        %v622 = vadd.f32 %v598, 1.0
        %v623 = vadd.f32 %v599, 1.0
        %v624 = vadd.f32 %v600, 1.0
        %v625 = vadd.f32 %v601, 1.0
        %v626 = vadd.f32 %v602, 1.0
        %v627 = vadd.f32 %v603, 1.0
        %v628 = vadd.f32 %v604, 1.0
        %v629 = vadd.f32 %v605, 1.0
        %v630 = vadd.f32 %v606, 1.0
        %v631 = vadd.f32 %v607, 1.0
        %v632 = vadd.f32 %v608, 1.0
        %v633 = vadd.f32 %v609, 1.0
        %v634 = vadd.f32 %v610, 1.0
        %v635 = vadd.f32 %v611, 1.0
        %v636 = vadd.f32 %v612, 1.0
        %v637 = vadd.f32 %v613, 1.0
        %v638 = vadd.f32 %v614, 1.0
        %v639 = vadd.f32 %v615, 1.0
        %v640 = vadd.f32 %v616, 1.0
        %v641 = vadd.f32 %v617, 1.0
        %v642 = vadd.f32 %v618, 1.0
        %v643 = vmul.f32 %v547, %v619
        %v644 = vmul.f32 %v548, %v620
        %v645 = vmul.f32 %v549, %v621
        %v646 = vmul.f32 %v550, %v622
        %v647 = vmul.f32 %v551, %v623
        %v648 = vmul.f32 %v552, %v624
        %v649 = vmul.f32 %v553, %v625
        %v650 = vmul.f32 %v554, %v626
        %v651 = vmul.f32 %v555, %v627
        %v652 = vmul.f32 %v556, %v628
        %v653 = vmul.f32 %v557, %v629
        %v654 = vmul.f32 %v558, %v630
        %v655 = vmul.f32 %v559, %v631
        %v656 = vmul.f32 %v560, %v632
        %v657 = vmul.f32 %v561, %v633
        %v658 = vmul.f32 %v562, %v634
        %v659 = vmul.f32 %v563, %v635
        %v660 = vmul.f32 %v564, %v636
        %v661 = vmul.f32 %v565, %v637
        %v662 = vmul.f32 %v566, %v638
        %v663 = vmul.f32 %v567, %v639
        %v664 = vmul.f32 %v568, %v640
        %v665 = vmul.f32 %v569, %v641
        %v666 = vmul.f32 %v570, %v642
        %v667 = vld [vmem:[#allocation2] sm:$0xff]
        %v668 = vld [vmem:[#allocation2 + $0x8] sm:$0xff]
        %v669 = vld [vmem:[#allocation2 + $0x10] sm:$0xff]
        %v670 = vld [vmem:[#allocation2 + $0x18] sm:$0xff]
        %v671 = vld [vmem:[#allocation2 + $0x20] sm:$0xff]
        %v672 = vld [vmem:[#allocation2 + $0x28] sm:$0xff]
        %v673 = vld [vmem:[#allocation2 + $0x30] sm:$0xff]
        %v674 = vld [vmem:[#allocation2 + $0x38] sm:$0xff]
        %v675 = vld [vmem:[#allocation2 + $0x40] sm:$0xff]
        %v676 = vld [vmem:[#allocation2 + $0x48] sm:$0xff]
        %v677 = vld [vmem:[#allocation2 + $0x50] sm:$0xff]
        %v678 = vld [vmem:[#allocation2 + $0x58] sm:$0xff]
        %v679 = vld [vmem:[%s301] sm:$0xff]
        %v680 = vld [vmem:[%s301 + $0x8] sm:$0xff]
        %v681 = vld [vmem:[%s301 + $0x10] sm:$0xff]
        %v682 = vld [vmem:[%s301 + $0x18] sm:$0xff]
        %v683 = vld [vmem:[%s301 + $0x20] sm:$0xff]
        %v684 = vld [vmem:[%s301 + $0x28] sm:$0xff]
        %v685 = vld [vmem:[%s301 + $0x30] sm:$0xff]
        %v686 = vld [vmem:[%s301 + $0x38] sm:$0xff]
        %v687 = vld [vmem:[%s301 + $0x40] sm:$0xff]
        %v688 = vld [vmem:[%s301 + $0x48] sm:$0xff]
        %v689 = vld [vmem:[%s301 + $0x50] sm:$0xff]
        %v690 = vld [vmem:[%s301 + $0x58] sm:$0xff]
        %v691 = vld [vmem:[%s301 + $0x60] sm:$0xff]
        %v692 = vld [vmem:[%s301 + $0x68] sm:$0xff]
        %v693 = vld [vmem:[%s301 + $0x70] sm:$0xff]
        %v694 = vld [vmem:[%s301 + $0x78] sm:$0xff]
        %v695 = vld [vmem:[%s301 + $0x80] sm:$0xff]
        %v696 = vld [vmem:[%s301 + $0x88] sm:$0xff]
        %v697 = vld [vmem:[%s301 + $0x90] sm:$0xff]
        %v698 = vld [vmem:[%s301 + $0x98] sm:$0xff]
        %v699 = vld [vmem:[%s301 + $0xa0] sm:$0xff]
        %v700 = vld [vmem:[%s301 + $0xa8] sm:$0xff]
        %v701 = vld [vmem:[%s301 + $0xb0] sm:$0xff]
        %v702 = vld [vmem:[%s301 + $0xb8] sm:$0xff]
        %v703 = vld [vmem:[%s301 + $0xc0] sm:$0xff]
        %v704 = vld [vmem:[%s301 + $0xc8] sm:$0xff]
        %v705 = vld [vmem:[%s301 + $0xd0] sm:$0xff]
        %v706 = vld [vmem:[%s301 + $0xd8] sm:$0xff]
        %v707 = vld [vmem:[%s301 + $0xe0] sm:$0xff]
        %v708 = vld [vmem:[%s301 + $0xe8] sm:$0xff]
        %v709 = vld [vmem:[%s301 + $0xf0] sm:$0xff]
        %v710 = vld [vmem:[%s301 + $0xf8] sm:$0xff]
        %711 = vmatprep.subr.mxu0 0.0
        %712 = vmatpush1.msra.mxu0 %v679
        %713 = vmatprep.subr.mxu0 0.0
        %714 = vmatpush1.msra.mxu0 %v680
        %715 = vmatprep.subr.mxu0 0.0
        %716 = vmatpush1.msra.mxu0 %v681
        %717 = vmatprep.subr.mxu0 0.0
        %718 = vmatpush1.msra.mxu0 %v682
        %719 = vmatprep.subr.mxu0 0.0
        %720 = vmatpush1.msra.mxu0 %v683
        %721 = vmatprep.subr.mxu0 0.0
        %722 = vmatpush1.msra.mxu0 %v684
        %723 = vmatprep.subr.mxu0 0.0
        %724 = vmatpush1.msra.mxu0 %v685
        %725 = vmatprep.subr.mxu0 0.0
        %726 = vmatpush1.msra.mxu0 %v686
        %727 = vmatprep.subr.mxu0 0.0
        %728 = vmatpush1.msra.mxu0 %v687
        %729 = vmatprep.subr.mxu0 0.0
        %730 = vmatpush1.msra.mxu0 %v688
        %731 = vmatprep.subr.mxu0 0.0
        %732 = vmatpush1.msra.mxu0 %v689
        %733 = vmatprep.subr.mxu0 0.0
        %734 = vmatpush1.msra.mxu0 %v690
        %735 = vmatprep.subr.mxu0 0.0
        %736 = vmatpush1.msra.mxu0 %v691
        %737 = vmatprep.subr.mxu0 0.0
        %738 = vmatpush1.msra.mxu0 %v692
        %739 = vmatprep.subr.mxu0 0.0
        %740 = vmatpush1.msra.mxu0 %v693
        %741 = vmatprep.subr.mxu0 0.0
        %742 = vmatpush1.msra.mxu0 %v694
        %743 = vmatprep.subr.mxu0 0.0
        %744 = vmatpush1.msra.mxu0 %v695
        %745 = vmatprep.subr.mxu0 0.0
        %746 = vmatpush1.msra.mxu0 %v696
        %747 = vmatprep.subr.mxu0 0.0
        %748 = vmatpush1.msra.mxu0 %v697
        %749 = vmatprep.subr.mxu0 0.0
        %750 = vmatpush1.msra.mxu0 %v698
        %751 = vmatprep.subr.mxu0 0.0
        %752 = vmatpush1.msra.mxu0 %v699
        %753 = vmatprep.subr.mxu0 0.0
        %754 = vmatpush1.msra.mxu0 %v700
        %755 = vmatprep.subr.mxu0 0.0
        %756 = vmatpush1.msra.mxu0 %v701
        %757 = vmatprep.subr.mxu0 0.0
        %758 = vmatpush1.msra.mxu0 %v702
        %759 = vmatprep.subr.mxu0 0.0
        %760 = vmatpush1.msra.mxu0 %v703
        %761 = vmatprep.subr.mxu0 0.0
        %762 = vmatpush1.msra.mxu0 %v704
        %763 = vmatprep.subr.mxu0 0.0
        %764 = vmatpush1.msra.mxu0 %v705
        %765 = vmatprep.subr.mxu0 0.0
        %766 = vmatpush1.msra.mxu0 %v706
        %767 = vmatprep.subr.mxu0 0.0
        %768 = vmatpush1.msra.mxu0 %v707
        %769 = vmatprep.subr.mxu0 0.0
        %770 = vmatpush1.msra.mxu0 %v708
        %771 = vmatprep.subr.mxu0 0.0
        %772 = vmatpush1.msra.mxu0 %v709
        %773 = vmatprep.subr.mxu0 0.0
        %774 = vmatpush1.msra.mxu0 %v710
        %775 = vmatprep.mubr.f32.mxu0 %v644
        %776 = vmatmul.mubr.f32.gmra.mrb[0].mxu0 %v643
        %v777 = vpop.f32.mrb[0].mxu0
        %v778 = vadd.f32 0.0, %v777
        %v779 = vpop.f32.mrb[0].mxu0
        %780 = vmatprep.mubr.f32.mxu0 %v646
        %781 = vmatmul.mubr.f32.gmra.mrb[0].mxu0 %v645
        %v782 = vpop.f32.mrb[0].mxu0
        %v783 = vadd.f32 0.0, %v782
        %v784 = vpop.f32.mrb[0].mxu0
        %785 = vmatprep.mubr.f32.mxu0 %v648
        %786 = vmatmul.mubr.f32.gmra.mrb[0].mxu0 %v647
        %v787 = vpop.f32.mrb[0].mxu0
        %v788 = vadd.f32 0.0, %v787
        %v789 = vpop.f32.mrb[0].mxu0
        %790 = vmatprep.mubr.f32.mxu0 %v650
        %791 = vmatmul.mubr.f32.gmra.mrb[0].mxu0 %v649
        %v792 = vpop.f32.mrb[0].mxu0
        %v793 = vadd.f32 0.0, %v792
        %v794 = vpop.f32.mrb[0].mxu0
        %795 = vmatprep.mubr.f32.mxu0 %v652
        %796 = vmatmul.mubr.f32.gmra.mrb[0].mxu0 %v651
        %v797 = vpop.f32.mrb[0].mxu0
        %v798 = vadd.f32 0.0, %v797
        %v799 = vpop.f32.mrb[0].mxu0
        %800 = vmatprep.mubr.f32.mxu0 %v654
        %801 = vmatmul.mubr.f32.gmra.mrb[0].mxu0 %v653
        %v802 = vpop.f32.mrb[0].mxu0
        %v803 = vadd.f32 0.0, %v802
        %v804 = vpop.f32.mrb[0].mxu0
        %805 = vmatprep.mubr.f32.mxu0 %v656
        %806 = vmatmul.mubr.f32.gmra.mrb[0].mxu0 %v655
        %v807 = vpop.f32.mrb[0].mxu0
        %v808 = vadd.f32 0.0, %v807
        %v809 = vpop.f32.mrb[0].mxu0
        %810 = vmatprep.mubr.f32.mxu0 %v658
        %811 = vmatmul.mubr.f32.gmra.mrb[0].mxu0 %v657
        %v812 = vpop.f32.mrb[0].mxu0
        %v813 = vadd.f32 0.0, %v812
        %v814 = vpop.f32.mrb[0].mxu0
        %815 = vmatprep.mubr.f32.mxu0 %v660
        %816 = vmatmul.mubr.f32.gmra.mrb[0].mxu0 %v659
        %v817 = vpop.f32.mrb[0].mxu0
        %v818 = vadd.f32 0.0, %v817
        %v819 = vpop.f32.mrb[0].mxu0
        %820 = vmatprep.mubr.f32.mxu0 %v662
        %821 = vmatmul.mubr.f32.gmra.mrb[0].mxu0 %v661
        %v822 = vpop.f32.mrb[0].mxu0
        %v823 = vadd.f32 0.0, %v822
        %v824 = vpop.f32.mrb[0].mxu0
        %825 = vmatprep.mubr.f32.mxu0 %v664
        %826 = vmatmul.mubr.f32.gmra.mrb[0].mxu0 %v663
        %v827 = vpop.f32.mrb[0].mxu0
        %v828 = vadd.f32 0.0, %v827
        %v829 = vpop.f32.mrb[0].mxu0
        %830 = vmatprep.mubr.f32.mxu0 %v666
        %831 = vmatmul.mubr.f32.gmra.mrb[0].mxu0 %v665
        %v832 = vpop.f32.mrb[0].mxu0
        %v833 = vadd.f32 0.0, %v832
        %v834 = vpop.f32.mrb[0].mxu0
        %835 = vdwg.mxu0
        %v836 = vadd.f32 %v667, %v778
        %v837 = vadd.f32 %v668, %v783
        %v838 = vadd.f32 %v669, %v788
        %v839 = vadd.f32 %v670, %v793
        %v840 = vadd.f32 %v671, %v798
        %v841 = vadd.f32 %v672, %v803
        %v842 = vadd.f32 %v673, %v808
        %v843 = vadd.f32 %v674, %v813
        %v844 = vadd.f32 %v675, %v818
        %v845 = vadd.f32 %v676, %v823
        %v846 = vadd.f32 %v677, %v828
        %v847 = vadd.f32 %v678, %v833
        %848 = vst [vmem:[#allocation2] sm:$0xff] %v836
        %849 = vst [vmem:[#allocation2 + $0x8] sm:$0xff] %v837
        %850 = vst [vmem:[#allocation2 + $0x10] sm:$0xff] %v838
        %851 = vst [vmem:[#allocation2 + $0x18] sm:$0xff] %v839
        %852 = vst [vmem:[#allocation2 + $0x20] sm:$0xff] %v840
        %853 = vst [vmem:[#allocation2 + $0x28] sm:$0xff] %v841
        %854 = vst [vmem:[#allocation2 + $0x30] sm:$0xff] %v842
        %855 = vst [vmem:[#allocation2 + $0x38] sm:$0xff] %v843
        %856 = vst [vmem:[#allocation2 + $0x40] sm:$0xff] %v844
        %857 = vst [vmem:[#allocation2 + $0x48] sm:$0xff] %v845
        %858 = vst [vmem:[#allocation2 + $0x50] sm:$0xff] %v846
        %859 = vst [vmem:[#allocation2 + $0x58] sm:$0xff] %v847
        %p860 = scmp.eq.s32.totalorder %s30, 1
        // Predicated region
        $region57: #{tpu_custom_call.1} parent=39 // pred_check
          %p861 = pneg %p860
        $region58: #{tpu_custom_call.1} parent=39 // pred_check_branch
          %863 = sbr.rel (%p861) target = $region60
        $region59: #{tpu_custom_call.1} parent=39 // pred_region
          %v864 = vld [vmem:[#allocation2] sm:$0xff]
          %v865 = vld [vmem:[#allocation2 + $0x8] sm:$0xff]
          %v866 = vld [vmem:[#allocation2 + $0x10] sm:$0xff]
          %v867 = vld [vmem:[#allocation2 + $0x18] sm:$0xff]
          %v868 = vld [vmem:[#allocation2 + $0x20] sm:$0xff]
          %v869 = vld [vmem:[#allocation2 + $0x28] sm:$0xff]
          %v870 = vld [vmem:[#allocation2 + $0x30] sm:$0xff]
          %v871 = vld [vmem:[#allocation2 + $0x38] sm:$0xff]
          %v872 = vld [vmem:[#allocation2 + $0x40] sm:$0xff]
          %v873 = vld [vmem:[#allocation2 + $0x48] sm:$0xff]
          %v874 = vld [vmem:[#allocation2 + $0x50] sm:$0xff]
          %v875 = vld [vmem:[#allocation2 + $0x58] sm:$0xff]
          %v876 = vld [vmem:[%s3] sm:$0x1]
          %v878 = vlaneseq
          %v879 = vshrl.u32 %v878, 7
          %v880 = vsub.s32 0, %v879
          %v881 = vrot.slane %v876, %v880
          %v883 = vmul.f32 %v881, %v864
          %v884 = vmul.f32 %v881, %v865
          %v885 = vmul.f32 %v881, %v866
          %v886 = vmul.f32 %v881, %v867
          %v887 = vmul.f32 %v881, %v868
          %v888 = vmul.f32 %v881, %v869
          %v889 = vmul.f32 %v881, %v870
          %v890 = vmul.f32 %v881, %v871
          %v891 = vmul.f32 %v881, %v872
          %v892 = vmul.f32 %v881, %v873
          %v893 = vmul.f32 %v881, %v874
          %v894 = vmul.f32 %v881, %v875
          %v895 = vld [vmem:[%s4] sm:$0x1]
          %v897 = vlaneseq
          %v898 = vshrl.u32 %v897, 7
          %v899 = vsub.s32 0, %v898
          %v900 = vrot.slane %v895, %v899
          %v902 = vadd.f32 %v883, %v900
          %v903 = vadd.f32 %v884, %v900
          %v904 = vadd.f32 %v885, %v900
          %v905 = vadd.f32 %v886, %v900
          %v906 = vadd.f32 %v887, %v900
          %v907 = vadd.f32 %v888, %v900
          %v908 = vadd.f32 %v889, %v900
          %v909 = vadd.f32 %v890, %v900
          %v910 = vadd.f32 %v891, %v900
          %v911 = vadd.f32 %v892, %v900
          %v912 = vadd.f32 %v893, %v900
          %v913 = vadd.f32 %v894, %v900
          %v914 = vand.u32 2147483647, %v902
          %vm915 = vcmp.le.f32.partialorder %v914, 0.7853982
          %vm916 = vcmp.lt.s32.totalorder %v902, 0
          %v917 = vand.u32 %v902, 2139095040
          %v918 = vshrl.u32 %v917, 23
          %v919 = vsub.s32 %v918, 127
          %v920 = vand.u32 2147483647, %v902
          %v921 = vand.u32 %v920, 8388607
          %v922 = vor.u32 %v921, 8388608
          %v923 = vsub.s32 0, %v922
          %v924 = vadd.s32 %v919, 1
          %vm925 = vcmp.gt.s32.totalorder %v924, 0
          %v926 = vsel %vm925, %v924, 0
          %v927 = vshrl.u32 %v926, 5
          %v928 = vand.u32 %v926, 31
          %v929 = vsub.s32 32, %v928
          %v930 = vshrl.u32 683565275, %v929
          %v931 = vshll.u32 683565275, %v928
          %v932 = vshrl.u32 2475754826, %v929
          %v933 = vor.u32 %v931, %v932
          %v934 = vshll.u32 2475754826, %v928
          %v935 = vshrl.u32 2131351028, %v929
          %v936 = vor.u32 %v934, %v935
          %v937 = vshll.u32 2131351028, %v928
          %v938 = vshrl.u32 2102212464, %v929
          %v939 = vor.u32 %v937, %v938
          %v940 = vshll.u32 2102212464, %v928
          %v941 = vshrl.u32 920167782, %v929
          %v942 = vor.u32 %v940, %v941
          %v943 = vshll.u32 920167782, %v928
          %v944 = vshrl.u32 1326507024, %v929
          %v945 = vor.u32 %v943, %v944
          %vm946 = vcmp.lt.s32.totalorder %v927, 1
          %vm947 = vcmp.lt.s32.totalorder %v927, 2
          %vm948 = vcmp.lt.s32.totalorder %v927, 3
          %vm949 = vcmp.lt.s32.totalorder %v927, 4
          %v950 = vsel %vm946, %v930, %v933
          %v951 = vsel %vm949, %v939, 2102212464
          %v952 = vsel %vm948, %v936, %v951
          %v953 = vsel %vm947, %v950, %v952
          %v954 = vsel %vm946, %v933, %v936
          %v955 = vsel %vm949, %v942, 920167782
          %v956 = vsel %vm948, %v939, %v955
          %v957 = vsel %vm947, %v954, %v956
          %v958 = vsel %vm946, %v936, %v939
          %v959 = vsel %vm949, %v945, 1326507024
          %v960 = vsel %vm948, %v942, %v959
          %v961 = vsel %vm947, %v958, %v960
          %v962 = vshll.u32 %v922, 8
          %v963 = vmul.u32.u64.compose %v962, %v961
          %v964 = vextract.low.u32 %v963
          %v965 = vextract.high.u32 %v963
          %v966 = vmul.u32.u64.compose %v962, %v957
          %v967 = vextract.low.u32 %v966
          %v968 = vextract.high.u32 %v966
          %v969 = vmul.u32 %v962, %v953
          %v970 = vadd.s32 %v965, %v967
          %vm971 = vc.u32 %v965, %v967
          %v972 = vadd.s32 %v968, 1
          %v973 = vsel %vm971, %v972, %v968
          %v974 = vadd.s32 %v969, %v973
          %v975 = vadd.s32 %v974, 536870912
          %v976 = vshrl.u32 %v975, 30
          %v977 = vshll.u32 %v976, 30
          %v978 = vsub.s32 %v974, %v977
          %vm979 = vcmp.lt.s32.totalorder %v978, 0
          %v980 = vsub.s32 0, %v978
          %v981 = vsel %vm979, %v980, %v978
          %v982 = vclz %v981
          %v983 = vsub.s32 %v982, 2
          %vm984 = vcmp.gt.s32.totalorder 0, %v983
          %v985 = vsel %vm984, 0, %v983
          %v986 = vsub.s32 32, %v985
          %v987 = vshll.u32 %v978, %v985
          %v988 = vshrl.u32 %v970, %v986
          %v989 = vor.u32 %v987, %v988
          %v990 = vsub.s32 4294967266, %v985
          %v991 = vadd.s32 %v990, 127
          %v992 = vshll.u32 %v991, 23
          %v993 = vor.u32 4788187, %v992
          %v994 = vand.u32 2147483647, %v993
          %v996 = vcvt.s32.f32 %v989
          %v997 = vmul.f32 %v996, %v994
          %v998 = vxor.u32 %v997, 2147483648
          %v999 = vsel %vm916, %v998, %v997
          %v1000 = vsub.s32 4, %v976
          %v1001 = vsel %vm916, %v1000, %v976
          %v1002 = vsel %vm915, %v902, %v999
          %v1003 = vsel %vm915, 0, %v1001
          %v1004 = vcosq.f32.pop %v1002
          %v1005 = vsinq.f32.pop %v1002
          %vm1006 = vweird.f32 %v902
          %v1007 = vand.u32 %v1003, 3
          %vm1008 = vcmp.lt.s32.totalorder %v1007, 2
          %vm1009 = vcmp.eq.s32.totalorder %v1007, 0
          %v1010 = vxor.u32 %v1005, 2147483648
          %v1011 = vsel %vm1009, %v1004, %v1010
          %vm1012 = vcmp.eq.s32.totalorder %v1007, 2
          %v1013 = vxor.u32 %v1004, 2147483648
          %v1014 = vsel %vm1012, %v1013, %v1005
          %v1015 = vsel %vm1008, %v1011, %v1014
          %v1016 = vsel %vm1006, nan, %v1015
          %v1017 = vand.u32 2147483647, %v903
          %vm1018 = vcmp.le.f32.partialorder %v1017, 0.7853982
          %vm1019 = vcmp.lt.s32.totalorder %v903, 0
          %v1020 = vand.u32 %v903, 2139095040
          %v1021 = vshrl.u32 %v1020, 23
          %v1022 = vsub.s32 %v1021, 127
          %v1023 = vand.u32 2147483647, %v903
          %v1024 = vand.u32 %v1023, 8388607
          %v1025 = vor.u32 %v1024, 8388608
          %v1026 = vsub.s32 0, %v1025
          %v1027 = vadd.s32 %v1022, 1
          %vm1028 = vcmp.gt.s32.totalorder %v1027, 0
          %v1029 = vsel %vm1028, %v1027, 0
          %v1030 = vshrl.u32 %v1029, 5
          %v1031 = vand.u32 %v1029, 31
          %v1032 = vsub.s32 32, %v1031
          %v1033 = vshrl.u32 683565275, %v1032
          %v1034 = vshll.u32 683565275, %v1031
          %v1035 = vshrl.u32 2475754826, %v1032
          %v1036 = vor.u32 %v1034, %v1035
          %v1037 = vshll.u32 2475754826, %v1031
          %v1038 = vshrl.u32 2131351028, %v1032
          %v1039 = vor.u32 %v1037, %v1038
          %v1040 = vshll.u32 2131351028, %v1031
          %v1041 = vshrl.u32 2102212464, %v1032
          %v1042 = vor.u32 %v1040, %v1041
          %v1043 = vshll.u32 2102212464, %v1031
          %v1044 = vshrl.u32 920167782, %v1032
          %v1045 = vor.u32 %v1043, %v1044
          %v1046 = vshll.u32 920167782, %v1031
          %v1047 = vshrl.u32 1326507024, %v1032
          %v1048 = vor.u32 %v1046, %v1047
          %vm1049 = vcmp.lt.s32.totalorder %v1030, 1
          %vm1050 = vcmp.lt.s32.totalorder %v1030, 2
          %vm1051 = vcmp.lt.s32.totalorder %v1030, 3
          %vm1052 = vcmp.lt.s32.totalorder %v1030, 4
          %v1053 = vsel %vm1049, %v1033, %v1036
          %v1054 = vsel %vm1052, %v1042, 2102212464
          %v1055 = vsel %vm1051, %v1039, %v1054
          %v1056 = vsel %vm1050, %v1053, %v1055
          %v1057 = vsel %vm1049, %v1036, %v1039
          %v1058 = vsel %vm1052, %v1045, 920167782
          %v1059 = vsel %vm1051, %v1042, %v1058
          %v1060 = vsel %vm1050, %v1057, %v1059
          %v1061 = vsel %vm1049, %v1039, %v1042
          %v1062 = vsel %vm1052, %v1048, 1326507024
          %v1063 = vsel %vm1051, %v1045, %v1062
          %v1064 = vsel %vm1050, %v1061, %v1063
          %v1065 = vshll.u32 %v1025, 8
          %v1066 = vmul.u32.u64.compose %v1065, %v1064
          %v1067 = vextract.low.u32 %v1066
          %v1068 = vextract.high.u32 %v1066
          %v1069 = vmul.u32.u64.compose %v1065, %v1060
          %v1070 = vextract.low.u32 %v1069
          %v1071 = vextract.high.u32 %v1069
          %v1072 = vmul.u32 %v1065, %v1056
          %v1073 = vadd.s32 %v1068, %v1070
          %vm1074 = vc.u32 %v1068, %v1070
          %v1075 = vadd.s32 %v1071, 1
          %v1076 = vsel %vm1074, %v1075, %v1071
          %v1077 = vadd.s32 %v1072, %v1076
          %v1078 = vadd.s32 %v1077, 536870912
          %v1079 = vshrl.u32 %v1078, 30
          %v1080 = vshll.u32 %v1079, 30
          %v1081 = vsub.s32 %v1077, %v1080
          %vm1082 = vcmp.lt.s32.totalorder %v1081, 0
          %v1083 = vsub.s32 0, %v1081
          %v1084 = vsel %vm1082, %v1083, %v1081
          %v1085 = vclz %v1084
          %v1086 = vsub.s32 %v1085, 2
          %vm1087 = vcmp.gt.s32.totalorder 0, %v1086
          %v1088 = vsel %vm1087, 0, %v1086
          %v1089 = vsub.s32 32, %v1088
          %v1090 = vshll.u32 %v1081, %v1088
          %v1091 = vshrl.u32 %v1073, %v1089
          %v1092 = vor.u32 %v1090, %v1091
          %v1093 = vsub.s32 4294967266, %v1088
          %v1094 = vadd.s32 %v1093, 127
          %v1095 = vshll.u32 %v1094, 23
          %v1096 = vor.u32 4788187, %v1095
          %v1097 = vand.u32 2147483647, %v1096
          %v1099 = vcvt.s32.f32 %v1092
          %v1100 = vmul.f32 %v1099, %v1097
          %v1101 = vxor.u32 %v1100, 2147483648
          %v1102 = vsel %vm1019, %v1101, %v1100
          %v1103 = vsub.s32 4, %v1079
          %v1104 = vsel %vm1019, %v1103, %v1079
          %v1105 = vsel %vm1018, %v903, %v1102
          %v1106 = vsel %vm1018, 0, %v1104
          %v1107 = vcosq.f32.pop %v1105
          %v1108 = vsinq.f32.pop %v1105
          %vm1109 = vweird.f32 %v903
          %v1110 = vand.u32 %v1106, 3
          %vm1111 = vcmp.lt.s32.totalorder %v1110, 2
          %vm1112 = vcmp.eq.s32.totalorder %v1110, 0
          %v1113 = vxor.u32 %v1108, 2147483648
          %v1114 = vsel %vm1112, %v1107, %v1113
          %vm1115 = vcmp.eq.s32.totalorder %v1110, 2
          %v1116 = vxor.u32 %v1107, 2147483648
          %v1117 = vsel %vm1115, %v1116, %v1108
          %v1118 = vsel %vm1111, %v1114, %v1117
          %v1119 = vsel %vm1109, nan, %v1118
          %v1120 = vand.u32 2147483647, %v904
          %vm1121 = vcmp.le.f32.partialorder %v1120, 0.7853982
          %vm1122 = vcmp.lt.s32.totalorder %v904, 0
          %v1123 = vand.u32 %v904, 2139095040
          %v1124 = vshrl.u32 %v1123, 23
          %v1125 = vsub.s32 %v1124, 127
          %v1126 = vand.u32 2147483647, %v904
          %v1127 = vand.u32 %v1126, 8388607
          %v1128 = vor.u32 %v1127, 8388608
          %v1129 = vsub.s32 0, %v1128
          %v1130 = vadd.s32 %v1125, 1
          %vm1131 = vcmp.gt.s32.totalorder %v1130, 0
          %v1132 = vsel %vm1131, %v1130, 0
          %v1133 = vshrl.u32 %v1132, 5
          %v1134 = vand.u32 %v1132, 31
          %v1135 = vsub.s32 32, %v1134
          %v1136 = vshrl.u32 683565275, %v1135
          %v1137 = vshll.u32 683565275, %v1134
          %v1138 = vshrl.u32 2475754826, %v1135
          %v1139 = vor.u32 %v1137, %v1138
          %v1140 = vshll.u32 2475754826, %v1134
          %v1141 = vshrl.u32 2131351028, %v1135
          %v1142 = vor.u32 %v1140, %v1141
          %v1143 = vshll.u32 2131351028, %v1134
          %v1144 = vshrl.u32 2102212464, %v1135
          %v1145 = vor.u32 %v1143, %v1144
          %v1146 = vshll.u32 2102212464, %v1134
          %v1147 = vshrl.u32 920167782, %v1135
          %v1148 = vor.u32 %v1146, %v1147
          %v1149 = vshll.u32 920167782, %v1134
          %v1150 = vshrl.u32 1326507024, %v1135
          %v1151 = vor.u32 %v1149, %v1150
          %vm1152 = vcmp.lt.s32.totalorder %v1133, 1
          %vm1153 = vcmp.lt.s32.totalorder %v1133, 2
          %vm1154 = vcmp.lt.s32.totalorder %v1133, 3
          %vm1155 = vcmp.lt.s32.totalorder %v1133, 4
          %v1156 = vsel %vm1152, %v1136, %v1139
          %v1157 = vsel %vm1155, %v1145, 2102212464
          %v1158 = vsel %vm1154, %v1142, %v1157
          %v1159 = vsel %vm1153, %v1156, %v1158
          %v1160 = vsel %vm1152, %v1139, %v1142
          %v1161 = vsel %vm1155, %v1148, 920167782
          %v1162 = vsel %vm1154, %v1145, %v1161
          %v1163 = vsel %vm1153, %v1160, %v1162
          %v1164 = vsel %vm1152, %v1142, %v1145
          %v1165 = vsel %vm1155, %v1151, 1326507024
          %v1166 = vsel %vm1154, %v1148, %v1165
          %v1167 = vsel %vm1153, %v1164, %v1166
          %v1168 = vshll.u32 %v1128, 8
          %v1169 = vmul.u32.u64.compose %v1168, %v1167
          %v1170 = vextract.low.u32 %v1169
          %v1171 = vextract.high.u32 %v1169
          %v1172 = vmul.u32.u64.compose %v1168, %v1163
          %v1173 = vextract.low.u32 %v1172
          %v1174 = vextract.high.u32 %v1172
          %v1175 = vmul.u32 %v1168, %v1159
          %v1176 = vadd.s32 %v1171, %v1173
          %vm1177 = vc.u32 %v1171, %v1173
          %v1178 = vadd.s32 %v1174, 1
          %v1179 = vsel %vm1177, %v1178, %v1174
          %v1180 = vadd.s32 %v1175, %v1179
          %v1181 = vadd.s32 %v1180, 536870912
          %v1182 = vshrl.u32 %v1181, 30
          %v1183 = vshll.u32 %v1182, 30
          %v1184 = vsub.s32 %v1180, %v1183
          %vm1185 = vcmp.lt.s32.totalorder %v1184, 0
          %v1186 = vsub.s32 0, %v1184
          %v1187 = vsel %vm1185, %v1186, %v1184
          %v1188 = vclz %v1187
          %v1189 = vsub.s32 %v1188, 2
          %vm1190 = vcmp.gt.s32.totalorder 0, %v1189
          %v1191 = vsel %vm1190, 0, %v1189
          %v1192 = vsub.s32 32, %v1191
          %v1193 = vshll.u32 %v1184, %v1191
          %v1194 = vshrl.u32 %v1176, %v1192
          %v1195 = vor.u32 %v1193, %v1194
          %v1196 = vsub.s32 4294967266, %v1191
          %v1197 = vadd.s32 %v1196, 127
          %v1198 = vshll.u32 %v1197, 23
          %v1199 = vor.u32 4788187, %v1198
          %v1200 = vand.u32 2147483647, %v1199
          %v1202 = vcvt.s32.f32 %v1195
          %v1203 = vmul.f32 %v1202, %v1200
          %v1204 = vxor.u32 %v1203, 2147483648
          %v1205 = vsel %vm1122, %v1204, %v1203
          %v1206 = vsub.s32 4, %v1182
          %v1207 = vsel %vm1122, %v1206, %v1182
          %v1208 = vsel %vm1121, %v904, %v1205
          %v1209 = vsel %vm1121, 0, %v1207
          %v1210 = vcosq.f32.pop %v1208
          %v1211 = vsinq.f32.pop %v1208
          %vm1212 = vweird.f32 %v904
          %v1213 = vand.u32 %v1209, 3
          %vm1214 = vcmp.lt.s32.totalorder %v1213, 2
          %vm1215 = vcmp.eq.s32.totalorder %v1213, 0
          %v1216 = vxor.u32 %v1211, 2147483648
          %v1217 = vsel %vm1215, %v1210, %v1216
          %vm1218 = vcmp.eq.s32.totalorder %v1213, 2
          %v1219 = vxor.u32 %v1210, 2147483648
          %v1220 = vsel %vm1218, %v1219, %v1211
          %v1221 = vsel %vm1214, %v1217, %v1220
          %v1222 = vsel %vm1212, nan, %v1221
          %v1223 = vand.u32 2147483647, %v905
          %vm1224 = vcmp.le.f32.partialorder %v1223, 0.7853982
          %vm1225 = vcmp.lt.s32.totalorder %v905, 0
          %v1226 = vand.u32 %v905, 2139095040
          %v1227 = vshrl.u32 %v1226, 23
          %v1228 = vsub.s32 %v1227, 127
          %v1229 = vand.u32 2147483647, %v905
          %v1230 = vand.u32 %v1229, 8388607
          %v1231 = vor.u32 %v1230, 8388608
          %v1232 = vsub.s32 0, %v1231
          %v1233 = vadd.s32 %v1228, 1
          %vm1234 = vcmp.gt.s32.totalorder %v1233, 0
          %v1235 = vsel %vm1234, %v1233, 0
          %v1236 = vshrl.u32 %v1235, 5
          %v1237 = vand.u32 %v1235, 31
          %v1238 = vsub.s32 32, %v1237
          %v1239 = vshrl.u32 683565275, %v1238
          %v1240 = vshll.u32 683565275, %v1237
          %v1241 = vshrl.u32 2475754826, %v1238
          %v1242 = vor.u32 %v1240, %v1241
          %v1243 = vshll.u32 2475754826, %v1237
          %v1244 = vshrl.u32 2131351028, %v1238
          %v1245 = vor.u32 %v1243, %v1244
          %v1246 = vshll.u32 2131351028, %v1237
          %v1247 = vshrl.u32 2102212464, %v1238
          %v1248 = vor.u32 %v1246, %v1247
          %v1249 = vshll.u32 2102212464, %v1237
          %v1250 = vshrl.u32 920167782, %v1238
          %v1251 = vor.u32 %v1249, %v1250
          %v1252 = vshll.u32 920167782, %v1237
          %v1253 = vshrl.u32 1326507024, %v1238
          %v1254 = vor.u32 %v1252, %v1253
          %vm1255 = vcmp.lt.s32.totalorder %v1236, 1
          %vm1256 = vcmp.lt.s32.totalorder %v1236, 2
          %vm1257 = vcmp.lt.s32.totalorder %v1236, 3
          %vm1258 = vcmp.lt.s32.totalorder %v1236, 4
          %v1259 = vsel %vm1255, %v1239, %v1242
          %v1260 = vsel %vm1258, %v1248, 2102212464
          %v1261 = vsel %vm1257, %v1245, %v1260
          %v1262 = vsel %vm1256, %v1259, %v1261
          %v1263 = vsel %vm1255, %v1242, %v1245
          %v1264 = vsel %vm1258, %v1251, 920167782
          %v1265 = vsel %vm1257, %v1248, %v1264
          %v1266 = vsel %vm1256, %v1263, %v1265
          %v1267 = vsel %vm1255, %v1245, %v1248
          %v1268 = vsel %vm1258, %v1254, 1326507024
          %v1269 = vsel %vm1257, %v1251, %v1268
          %v1270 = vsel %vm1256, %v1267, %v1269
          %v1271 = vshll.u32 %v1231, 8
          %v1272 = vmul.u32.u64.compose %v1271, %v1270
          %v1273 = vextract.low.u32 %v1272
          %v1274 = vextract.high.u32 %v1272
          %v1275 = vmul.u32.u64.compose %v1271, %v1266
          %v1276 = vextract.low.u32 %v1275
          %v1277 = vextract.high.u32 %v1275
          %v1278 = vmul.u32 %v1271, %v1262
          %v1279 = vadd.s32 %v1274, %v1276
          %vm1280 = vc.u32 %v1274, %v1276
          %v1281 = vadd.s32 %v1277, 1
          %v1282 = vsel %vm1280, %v1281, %v1277
          %v1283 = vadd.s32 %v1278, %v1282
          %v1284 = vadd.s32 %v1283, 536870912
          %v1285 = vshrl.u32 %v1284, 30
          %v1286 = vshll.u32 %v1285, 30
          %v1287 = vsub.s32 %v1283, %v1286
          %vm1288 = vcmp.lt.s32.totalorder %v1287, 0
          %v1289 = vsub.s32 0, %v1287
          %v1290 = vsel %vm1288, %v1289, %v1287
          %v1291 = vclz %v1290
          %v1292 = vsub.s32 %v1291, 2
          %vm1293 = vcmp.gt.s32.totalorder 0, %v1292
          %v1294 = vsel %vm1293, 0, %v1292
          %v1295 = vsub.s32 32, %v1294
          %v1296 = vshll.u32 %v1287, %v1294
          %v1297 = vshrl.u32 %v1279, %v1295
          %v1298 = vor.u32 %v1296, %v1297
          %v1299 = vsub.s32 4294967266, %v1294
          %v1300 = vadd.s32 %v1299, 127
          %v1301 = vshll.u32 %v1300, 23
          %v1302 = vor.u32 4788187, %v1301
          %v1303 = vand.u32 2147483647, %v1302
          %v1305 = vcvt.s32.f32 %v1298
          %v1306 = vmul.f32 %v1305, %v1303
          %v1307 = vxor.u32 %v1306, 2147483648
          %v1308 = vsel %vm1225, %v1307, %v1306
          %v1309 = vsub.s32 4, %v1285
          %v1310 = vsel %vm1225, %v1309, %v1285
          %v1311 = vsel %vm1224, %v905, %v1308
          %v1312 = vsel %vm1224, 0, %v1310
          %v1313 = vcosq.f32.pop %v1311
          %v1314 = vsinq.f32.pop %v1311
          %vm1315 = vweird.f32 %v905
          %v1316 = vand.u32 %v1312, 3
          %vm1317 = vcmp.lt.s32.totalorder %v1316, 2
          %vm1318 = vcmp.eq.s32.totalorder %v1316, 0
          %v1319 = vxor.u32 %v1314, 2147483648
          %v1320 = vsel %vm1318, %v1313, %v1319
          %vm1321 = vcmp.eq.s32.totalorder %v1316, 2
          %v1322 = vxor.u32 %v1313, 2147483648
          %v1323 = vsel %vm1321, %v1322, %v1314
          %v1324 = vsel %vm1317, %v1320, %v1323
          %v1325 = vsel %vm1315, nan, %v1324
          %v1326 = vand.u32 2147483647, %v906
          %vm1327 = vcmp.le.f32.partialorder %v1326, 0.7853982
          %vm1328 = vcmp.lt.s32.totalorder %v906, 0
          %v1329 = vand.u32 %v906, 2139095040
          %v1330 = vshrl.u32 %v1329, 23
          %v1331 = vsub.s32 %v1330, 127
          %v1332 = vand.u32 2147483647, %v906
          %v1333 = vand.u32 %v1332, 8388607
          %v1334 = vor.u32 %v1333, 8388608
          %v1335 = vsub.s32 0, %v1334
          %v1336 = vadd.s32 %v1331, 1
          %vm1337 = vcmp.gt.s32.totalorder %v1336, 0
          %v1338 = vsel %vm1337, %v1336, 0
          %v1339 = vshrl.u32 %v1338, 5
          %v1340 = vand.u32 %v1338, 31
          %v1341 = vsub.s32 32, %v1340
          %v1342 = vshrl.u32 683565275, %v1341
          %v1343 = vshll.u32 683565275, %v1340
          %v1344 = vshrl.u32 2475754826, %v1341
          %v1345 = vor.u32 %v1343, %v1344
          %v1346 = vshll.u32 2475754826, %v1340
          %v1347 = vshrl.u32 2131351028, %v1341
          %v1348 = vor.u32 %v1346, %v1347
          %v1349 = vshll.u32 2131351028, %v1340
          %v1350 = vshrl.u32 2102212464, %v1341
          %v1351 = vor.u32 %v1349, %v1350
          %v1352 = vshll.u32 2102212464, %v1340
          %v1353 = vshrl.u32 920167782, %v1341
          %v1354 = vor.u32 %v1352, %v1353
          %v1355 = vshll.u32 920167782, %v1340
          %v1356 = vshrl.u32 1326507024, %v1341
          %v1357 = vor.u32 %v1355, %v1356
          %vm1358 = vcmp.lt.s32.totalorder %v1339, 1
          %vm1359 = vcmp.lt.s32.totalorder %v1339, 2
          %vm1360 = vcmp.lt.s32.totalorder %v1339, 3
          %vm1361 = vcmp.lt.s32.totalorder %v1339, 4
          %v1362 = vsel %vm1358, %v1342, %v1345
          %v1363 = vsel %vm1361, %v1351, 2102212464
          %v1364 = vsel %vm1360, %v1348, %v1363
          %v1365 = vsel %vm1359, %v1362, %v1364
          %v1366 = vsel %vm1358, %v1345, %v1348
          %v1367 = vsel %vm1361, %v1354, 920167782
          %v1368 = vsel %vm1360, %v1351, %v1367
          %v1369 = vsel %vm1359, %v1366, %v1368
          %v1370 = vsel %vm1358, %v1348, %v1351
          %v1371 = vsel %vm1361, %v1357, 1326507024
          %v1372 = vsel %vm1360, %v1354, %v1371
          %v1373 = vsel %vm1359, %v1370, %v1372
          %v1374 = vshll.u32 %v1334, 8
          %v1375 = vmul.u32.u64.compose %v1374, %v1373
          %v1376 = vextract.low.u32 %v1375
          %v1377 = vextract.high.u32 %v1375
          %v1378 = vmul.u32.u64.compose %v1374, %v1369
          %v1379 = vextract.low.u32 %v1378
          %v1380 = vextract.high.u32 %v1378
          %v1381 = vmul.u32 %v1374, %v1365
          %v1382 = vadd.s32 %v1377, %v1379
          %vm1383 = vc.u32 %v1377, %v1379
          %v1384 = vadd.s32 %v1380, 1
          %v1385 = vsel %vm1383, %v1384, %v1380
          %v1386 = vadd.s32 %v1381, %v1385
          %v1387 = vadd.s32 %v1386, 536870912
          %v1388 = vshrl.u32 %v1387, 30
          %v1389 = vshll.u32 %v1388, 30
          %v1390 = vsub.s32 %v1386, %v1389
          %vm1391 = vcmp.lt.s32.totalorder %v1390, 0
          %v1392 = vsub.s32 0, %v1390
          %v1393 = vsel %vm1391, %v1392, %v1390
          %v1394 = vclz %v1393
          %v1395 = vsub.s32 %v1394, 2
          %vm1396 = vcmp.gt.s32.totalorder 0, %v1395
          %v1397 = vsel %vm1396, 0, %v1395
          %v1398 = vsub.s32 32, %v1397
          %v1399 = vshll.u32 %v1390, %v1397
          %v1400 = vshrl.u32 %v1382, %v1398
          %v1401 = vor.u32 %v1399, %v1400
          %v1402 = vsub.s32 4294967266, %v1397
          %v1403 = vadd.s32 %v1402, 127
          %v1404 = vshll.u32 %v1403, 23
          %v1405 = vor.u32 4788187, %v1404
          %v1406 = vand.u32 2147483647, %v1405
          %v1408 = vcvt.s32.f32 %v1401
          %v1409 = vmul.f32 %v1408, %v1406
          %v1410 = vxor.u32 %v1409, 2147483648
          %v1411 = vsel %vm1328, %v1410, %v1409
          %v1412 = vsub.s32 4, %v1388
          %v1413 = vsel %vm1328, %v1412, %v1388
          %v1414 = vsel %vm1327, %v906, %v1411
          %v1415 = vsel %vm1327, 0, %v1413
          %v1416 = vcosq.f32.pop %v1414
          %v1417 = vsinq.f32.pop %v1414
          %vm1418 = vweird.f32 %v906
          %v1419 = vand.u32 %v1415, 3
          %vm1420 = vcmp.lt.s32.totalorder %v1419, 2
          %vm1421 = vcmp.eq.s32.totalorder %v1419, 0
          %v1422 = vxor.u32 %v1417, 2147483648
          %v1423 = vsel %vm1421, %v1416, %v1422
          %vm1424 = vcmp.eq.s32.totalorder %v1419, 2
          %v1425 = vxor.u32 %v1416, 2147483648
          %v1426 = vsel %vm1424, %v1425, %v1417
          %v1427 = vsel %vm1420, %v1423, %v1426
          %v1428 = vsel %vm1418, nan, %v1427
          %v1429 = vand.u32 2147483647, %v907
          %vm1430 = vcmp.le.f32.partialorder %v1429, 0.7853982
          %vm1431 = vcmp.lt.s32.totalorder %v907, 0
          %v1432 = vand.u32 %v907, 2139095040
          %v1433 = vshrl.u32 %v1432, 23
          %v1434 = vsub.s32 %v1433, 127
          %v1435 = vand.u32 2147483647, %v907
          %v1436 = vand.u32 %v1435, 8388607
          %v1437 = vor.u32 %v1436, 8388608
          %v1438 = vsub.s32 0, %v1437
          %v1439 = vadd.s32 %v1434, 1
          %vm1440 = vcmp.gt.s32.totalorder %v1439, 0
          %v1441 = vsel %vm1440, %v1439, 0
          %v1442 = vshrl.u32 %v1441, 5
          %v1443 = vand.u32 %v1441, 31
          %v1444 = vsub.s32 32, %v1443
          %v1445 = vshrl.u32 683565275, %v1444
          %v1446 = vshll.u32 683565275, %v1443
          %v1447 = vshrl.u32 2475754826, %v1444
          %v1448 = vor.u32 %v1446, %v1447
          %v1449 = vshll.u32 2475754826, %v1443
          %v1450 = vshrl.u32 2131351028, %v1444
          %v1451 = vor.u32 %v1449, %v1450
          %v1452 = vshll.u32 2131351028, %v1443
          %v1453 = vshrl.u32 2102212464, %v1444
          %v1454 = vor.u32 %v1452, %v1453
          %v1455 = vshll.u32 2102212464, %v1443
          %v1456 = vshrl.u32 920167782, %v1444
          %v1457 = vor.u32 %v1455, %v1456
          %v1458 = vshll.u32 920167782, %v1443
          %v1459 = vshrl.u32 1326507024, %v1444
          %v1460 = vor.u32 %v1458, %v1459
          %vm1461 = vcmp.lt.s32.totalorder %v1442, 1
          %vm1462 = vcmp.lt.s32.totalorder %v1442, 2
          %vm1463 = vcmp.lt.s32.totalorder %v1442, 3
          %vm1464 = vcmp.lt.s32.totalorder %v1442, 4
          %v1465 = vsel %vm1461, %v1445, %v1448
          %v1466 = vsel %vm1464, %v1454, 2102212464
          %v1467 = vsel %vm1463, %v1451, %v1466
          %v1468 = vsel %vm1462, %v1465, %v1467
          %v1469 = vsel %vm1461, %v1448, %v1451
          %v1470 = vsel %vm1464, %v1457, 920167782
          %v1471 = vsel %vm1463, %v1454, %v1470
          %v1472 = vsel %vm1462, %v1469, %v1471
          %v1473 = vsel %vm1461, %v1451, %v1454
          %v1474 = vsel %vm1464, %v1460, 1326507024
          %v1475 = vsel %vm1463, %v1457, %v1474
          %v1476 = vsel %vm1462, %v1473, %v1475
          %v1477 = vshll.u32 %v1437, 8
          %v1478 = vmul.u32.u64.compose %v1477, %v1476
          %v1479 = vextract.low.u32 %v1478
          %v1480 = vextract.high.u32 %v1478
          %v1481 = vmul.u32.u64.compose %v1477, %v1472
          %v1482 = vextract.low.u32 %v1481
          %v1483 = vextract.high.u32 %v1481
          %v1484 = vmul.u32 %v1477, %v1468
          %v1485 = vadd.s32 %v1480, %v1482
          %vm1486 = vc.u32 %v1480, %v1482
          %v1487 = vadd.s32 %v1483, 1
          %v1488 = vsel %vm1486, %v1487, %v1483
          %v1489 = vadd.s32 %v1484, %v1488
          %v1490 = vadd.s32 %v1489, 536870912
          %v1491 = vshrl.u32 %v1490, 30
          %v1492 = vshll.u32 %v1491, 30
          %v1493 = vsub.s32 %v1489, %v1492
          %vm1494 = vcmp.lt.s32.totalorder %v1493, 0
          %v1495 = vsub.s32 0, %v1493
          %v1496 = vsel %vm1494, %v1495, %v1493
          %v1497 = vclz %v1496
          %v1498 = vsub.s32 %v1497, 2
          %vm1499 = vcmp.gt.s32.totalorder 0, %v1498
          %v1500 = vsel %vm1499, 0, %v1498
          %v1501 = vsub.s32 32, %v1500
          %v1502 = vshll.u32 %v1493, %v1500
          %v1503 = vshrl.u32 %v1485, %v1501
          %v1504 = vor.u32 %v1502, %v1503
          %v1505 = vsub.s32 4294967266, %v1500
          %v1506 = vadd.s32 %v1505, 127
          %v1507 = vshll.u32 %v1506, 23
          %v1508 = vor.u32 4788187, %v1507
          %v1509 = vand.u32 2147483647, %v1508
          %v1511 = vcvt.s32.f32 %v1504
          %v1512 = vmul.f32 %v1511, %v1509
          %v1513 = vxor.u32 %v1512, 2147483648
          %v1514 = vsel %vm1431, %v1513, %v1512
          %v1515 = vsub.s32 4, %v1491
          %v1516 = vsel %vm1431, %v1515, %v1491
          %v1517 = vsel %vm1430, %v907, %v1514
          %v1518 = vsel %vm1430, 0, %v1516
          %v1519 = vcosq.f32.pop %v1517
          %v1520 = vsinq.f32.pop %v1517
          %vm1521 = vweird.f32 %v907
          %v1522 = vand.u32 %v1518, 3
          %vm1523 = vcmp.lt.s32.totalorder %v1522, 2
          %vm1524 = vcmp.eq.s32.totalorder %v1522, 0
          %v1525 = vxor.u32 %v1520, 2147483648
          %v1526 = vsel %vm1524, %v1519, %v1525
          %vm1527 = vcmp.eq.s32.totalorder %v1522, 2
          %v1528 = vxor.u32 %v1519, 2147483648
          %v1529 = vsel %vm1527, %v1528, %v1520
          %v1530 = vsel %vm1523, %v1526, %v1529
          %v1531 = vsel %vm1521, nan, %v1530
          %v1532 = vand.u32 2147483647, %v908
          %vm1533 = vcmp.le.f32.partialorder %v1532, 0.7853982
          %vm1534 = vcmp.lt.s32.totalorder %v908, 0
          %v1535 = vand.u32 %v908, 2139095040
          %v1536 = vshrl.u32 %v1535, 23
          %v1537 = vsub.s32 %v1536, 127
          %v1538 = vand.u32 2147483647, %v908
          %v1539 = vand.u32 %v1538, 8388607
          %v1540 = vor.u32 %v1539, 8388608
          %v1541 = vsub.s32 0, %v1540
          %v1542 = vadd.s32 %v1537, 1
          %vm1543 = vcmp.gt.s32.totalorder %v1542, 0
          %v1544 = vsel %vm1543, %v1542, 0
          %v1545 = vshrl.u32 %v1544, 5
          %v1546 = vand.u32 %v1544, 31
          %v1547 = vsub.s32 32, %v1546
          %v1548 = vshrl.u32 683565275, %v1547
          %v1549 = vshll.u32 683565275, %v1546
          %v1550 = vshrl.u32 2475754826, %v1547
          %v1551 = vor.u32 %v1549, %v1550
          %v1552 = vshll.u32 2475754826, %v1546
          %v1553 = vshrl.u32 2131351028, %v1547
          %v1554 = vor.u32 %v1552, %v1553
          %v1555 = vshll.u32 2131351028, %v1546
          %v1556 = vshrl.u32 2102212464, %v1547
          %v1557 = vor.u32 %v1555, %v1556
          %v1558 = vshll.u32 2102212464, %v1546
          %v1559 = vshrl.u32 920167782, %v1547
          %v1560 = vor.u32 %v1558, %v1559
          %v1561 = vshll.u32 920167782, %v1546
          %v1562 = vshrl.u32 1326507024, %v1547
          %v1563 = vor.u32 %v1561, %v1562
          %vm1564 = vcmp.lt.s32.totalorder %v1545, 1
          %vm1565 = vcmp.lt.s32.totalorder %v1545, 2
          %vm1566 = vcmp.lt.s32.totalorder %v1545, 3
          %vm1567 = vcmp.lt.s32.totalorder %v1545, 4
          %v1568 = vsel %vm1564, %v1548, %v1551
          %v1569 = vsel %vm1567, %v1557, 2102212464
          %v1570 = vsel %vm1566, %v1554, %v1569
          %v1571 = vsel %vm1565, %v1568, %v1570
          %v1572 = vsel %vm1564, %v1551, %v1554
          %v1573 = vsel %vm1567, %v1560, 920167782
          %v1574 = vsel %vm1566, %v1557, %v1573
          %v1575 = vsel %vm1565, %v1572, %v1574
          %v1576 = vsel %vm1564, %v1554, %v1557
          %v1577 = vsel %vm1567, %v1563, 1326507024
          %v1578 = vsel %vm1566, %v1560, %v1577
          %v1579 = vsel %vm1565, %v1576, %v1578
          %v1580 = vshll.u32 %v1540, 8
          %v1581 = vmul.u32.u64.compose %v1580, %v1579
          %v1582 = vextract.low.u32 %v1581
          %v1583 = vextract.high.u32 %v1581
          %v1584 = vmul.u32.u64.compose %v1580, %v1575
          %v1585 = vextract.low.u32 %v1584
          %v1586 = vextract.high.u32 %v1584
          %v1587 = vmul.u32 %v1580, %v1571
          %v1588 = vadd.s32 %v1583, %v1585
          %vm1589 = vc.u32 %v1583, %v1585
          %v1590 = vadd.s32 %v1586, 1
          %v1591 = vsel %vm1589, %v1590, %v1586
          %v1592 = vadd.s32 %v1587, %v1591
          %v1593 = vadd.s32 %v1592, 536870912
          %v1594 = vshrl.u32 %v1593, 30
          %v1595 = vshll.u32 %v1594, 30
          %v1596 = vsub.s32 %v1592, %v1595
          %vm1597 = vcmp.lt.s32.totalorder %v1596, 0
          %v1598 = vsub.s32 0, %v1596
          %v1599 = vsel %vm1597, %v1598, %v1596
          %v1600 = vclz %v1599
          %v1601 = vsub.s32 %v1600, 2
          %vm1602 = vcmp.gt.s32.totalorder 0, %v1601
          %v1603 = vsel %vm1602, 0, %v1601
          %v1604 = vsub.s32 32, %v1603
          %v1605 = vshll.u32 %v1596, %v1603
          %v1606 = vshrl.u32 %v1588, %v1604
          %v1607 = vor.u32 %v1605, %v1606
          %v1608 = vsub.s32 4294967266, %v1603
          %v1609 = vadd.s32 %v1608, 127
          %v1610 = vshll.u32 %v1609, 23
          %v1611 = vor.u32 4788187, %v1610
          %v1612 = vand.u32 2147483647, %v1611
          %v1614 = vcvt.s32.f32 %v1607
          %v1615 = vmul.f32 %v1614, %v1612
          %v1616 = vxor.u32 %v1615, 2147483648
          %v1617 = vsel %vm1534, %v1616, %v1615
          %v1618 = vsub.s32 4, %v1594
          %v1619 = vsel %vm1534, %v1618, %v1594
          %v1620 = vsel %vm1533, %v908, %v1617
          %v1621 = vsel %vm1533, 0, %v1619
          %v1622 = vcosq.f32.pop %v1620
          %v1623 = vsinq.f32.pop %v1620
          %vm1624 = vweird.f32 %v908
          %v1625 = vand.u32 %v1621, 3
          %vm1626 = vcmp.lt.s32.totalorder %v1625, 2
          %vm1627 = vcmp.eq.s32.totalorder %v1625, 0
          %v1628 = vxor.u32 %v1623, 2147483648
          %v1629 = vsel %vm1627, %v1622, %v1628
          %vm1630 = vcmp.eq.s32.totalorder %v1625, 2
          %v1631 = vxor.u32 %v1622, 2147483648
          %v1632 = vsel %vm1630, %v1631, %v1623
          %v1633 = vsel %vm1626, %v1629, %v1632
          %v1634 = vsel %vm1624, nan, %v1633
          %v1635 = vand.u32 2147483647, %v909
          %vm1636 = vcmp.le.f32.partialorder %v1635, 0.7853982
          %vm1637 = vcmp.lt.s32.totalorder %v909, 0
          %v1638 = vand.u32 %v909, 2139095040
          %v1639 = vshrl.u32 %v1638, 23
          %v1640 = vsub.s32 %v1639, 127
          %v1641 = vand.u32 2147483647, %v909
          %v1642 = vand.u32 %v1641, 8388607
          %v1643 = vor.u32 %v1642, 8388608
          %v1644 = vsub.s32 0, %v1643
          %v1645 = vadd.s32 %v1640, 1
          %vm1646 = vcmp.gt.s32.totalorder %v1645, 0
          %v1647 = vsel %vm1646, %v1645, 0
          %v1648 = vshrl.u32 %v1647, 5
          %v1649 = vand.u32 %v1647, 31
          %v1650 = vsub.s32 32, %v1649
          %v1651 = vshrl.u32 683565275, %v1650
          %v1652 = vshll.u32 683565275, %v1649
          %v1653 = vshrl.u32 2475754826, %v1650
          %v1654 = vor.u32 %v1652, %v1653
          %v1655 = vshll.u32 2475754826, %v1649
          %v1656 = vshrl.u32 2131351028, %v1650
          %v1657 = vor.u32 %v1655, %v1656
          %v1658 = vshll.u32 2131351028, %v1649
          %v1659 = vshrl.u32 2102212464, %v1650
          %v1660 = vor.u32 %v1658, %v1659
          %v1661 = vshll.u32 2102212464, %v1649
          %v1662 = vshrl.u32 920167782, %v1650
          %v1663 = vor.u32 %v1661, %v1662
          %v1664 = vshll.u32 920167782, %v1649
          %v1665 = vshrl.u32 1326507024, %v1650
          %v1666 = vor.u32 %v1664, %v1665
          %vm1667 = vcmp.lt.s32.totalorder %v1648, 1
          %vm1668 = vcmp.lt.s32.totalorder %v1648, 2
          %vm1669 = vcmp.lt.s32.totalorder %v1648, 3
          %vm1670 = vcmp.lt.s32.totalorder %v1648, 4
          %v1671 = vsel %vm1667, %v1651, %v1654
          %v1672 = vsel %vm1670, %v1660, 2102212464
          %v1673 = vsel %vm1669, %v1657, %v1672
          %v1674 = vsel %vm1668, %v1671, %v1673
          %v1675 = vsel %vm1667, %v1654, %v1657
          %v1676 = vsel %vm1670, %v1663, 920167782
          %v1677 = vsel %vm1669, %v1660, %v1676
          %v1678 = vsel %vm1668, %v1675, %v1677
          %v1679 = vsel %vm1667, %v1657, %v1660
          %v1680 = vsel %vm1670, %v1666, 1326507024
          %v1681 = vsel %vm1669, %v1663, %v1680
          %v1682 = vsel %vm1668, %v1679, %v1681
          %v1683 = vshll.u32 %v1643, 8
          %v1684 = vmul.u32.u64.compose %v1683, %v1682
          %v1685 = vextract.low.u32 %v1684
          %v1686 = vextract.high.u32 %v1684
          %v1687 = vmul.u32.u64.compose %v1683, %v1678
          %v1688 = vextract.low.u32 %v1687
          %v1689 = vextract.high.u32 %v1687
          %v1690 = vmul.u32 %v1683, %v1674
          %v1691 = vadd.s32 %v1686, %v1688
          %vm1692 = vc.u32 %v1686, %v1688
          %v1693 = vadd.s32 %v1689, 1
          %v1694 = vsel %vm1692, %v1693, %v1689
          %v1695 = vadd.s32 %v1690, %v1694
          %v1696 = vadd.s32 %v1695, 536870912
          %v1697 = vshrl.u32 %v1696, 30
          %v1698 = vshll.u32 %v1697, 30
          %v1699 = vsub.s32 %v1695, %v1698
          %vm1700 = vcmp.lt.s32.totalorder %v1699, 0
          %v1701 = vsub.s32 0, %v1699
          %v1702 = vsel %vm1700, %v1701, %v1699
          %v1703 = vclz %v1702
          %v1704 = vsub.s32 %v1703, 2
          %vm1705 = vcmp.gt.s32.totalorder 0, %v1704
          %v1706 = vsel %vm1705, 0, %v1704
          %v1707 = vsub.s32 32, %v1706
          %v1708 = vshll.u32 %v1699, %v1706
          %v1709 = vshrl.u32 %v1691, %v1707
          %v1710 = vor.u32 %v1708, %v1709
          %v1711 = vsub.s32 4294967266, %v1706
          %v1712 = vadd.s32 %v1711, 127
          %v1713 = vshll.u32 %v1712, 23
          %v1714 = vor.u32 4788187, %v1713
          %v1715 = vand.u32 2147483647, %v1714
          %v1717 = vcvt.s32.f32 %v1710
          %v1718 = vmul.f32 %v1717, %v1715
          %v1719 = vxor.u32 %v1718, 2147483648
          %v1720 = vsel %vm1637, %v1719, %v1718
          %v1721 = vsub.s32 4, %v1697
          %v1722 = vsel %vm1637, %v1721, %v1697
          %v1723 = vsel %vm1636, %v909, %v1720
          %v1724 = vsel %vm1636, 0, %v1722
          %v1725 = vcosq.f32.pop %v1723
          %v1726 = vsinq.f32.pop %v1723
          %vm1727 = vweird.f32 %v909
          %v1728 = vand.u32 %v1724, 3
          %vm1729 = vcmp.lt.s32.totalorder %v1728, 2
          %vm1730 = vcmp.eq.s32.totalorder %v1728, 0
          %v1731 = vxor.u32 %v1726, 2147483648
          %v1732 = vsel %vm1730, %v1725, %v1731
          %vm1733 = vcmp.eq.s32.totalorder %v1728, 2
          %v1734 = vxor.u32 %v1725, 2147483648
          %v1735 = vsel %vm1733, %v1734, %v1726
          %v1736 = vsel %vm1729, %v1732, %v1735
          %v1737 = vsel %vm1727, nan, %v1736
          %v1738 = vand.u32 2147483647, %v910
          %vm1739 = vcmp.le.f32.partialorder %v1738, 0.7853982
          %vm1740 = vcmp.lt.s32.totalorder %v910, 0
          %v1741 = vand.u32 %v910, 2139095040
          %v1742 = vshrl.u32 %v1741, 23
          %v1743 = vsub.s32 %v1742, 127
          %v1744 = vand.u32 2147483647, %v910
          %v1745 = vand.u32 %v1744, 8388607
          %v1746 = vor.u32 %v1745, 8388608
          %v1747 = vsub.s32 0, %v1746
          %v1748 = vadd.s32 %v1743, 1
          %vm1749 = vcmp.gt.s32.totalorder %v1748, 0
          %v1750 = vsel %vm1749, %v1748, 0
          %v1751 = vshrl.u32 %v1750, 5
          %v1752 = vand.u32 %v1750, 31
          %v1753 = vsub.s32 32, %v1752
          %v1754 = vshrl.u32 683565275, %v1753
          %v1755 = vshll.u32 683565275, %v1752
          %v1756 = vshrl.u32 2475754826, %v1753
          %v1757 = vor.u32 %v1755, %v1756
          %v1758 = vshll.u32 2475754826, %v1752
          %v1759 = vshrl.u32 2131351028, %v1753
          %v1760 = vor.u32 %v1758, %v1759
          %v1761 = vshll.u32 2131351028, %v1752
          %v1762 = vshrl.u32 2102212464, %v1753
          %v1763 = vor.u32 %v1761, %v1762
          %v1764 = vshll.u32 2102212464, %v1752
          %v1765 = vshrl.u32 920167782, %v1753
          %v1766 = vor.u32 %v1764, %v1765
          %v1767 = vshll.u32 920167782, %v1752
          %v1768 = vshrl.u32 1326507024, %v1753
          %v1769 = vor.u32 %v1767, %v1768
          %vm1770 = vcmp.lt.s32.totalorder %v1751, 1
          %vm1771 = vcmp.lt.s32.totalorder %v1751, 2
          %vm1772 = vcmp.lt.s32.totalorder %v1751, 3
          %vm1773 = vcmp.lt.s32.totalorder %v1751, 4
          %v1774 = vsel %vm1770, %v1754, %v1757
          %v1775 = vsel %vm1773, %v1763, 2102212464
          %v1776 = vsel %vm1772, %v1760, %v1775
          %v1777 = vsel %vm1771, %v1774, %v1776
          %v1778 = vsel %vm1770, %v1757, %v1760
          %v1779 = vsel %vm1773, %v1766, 920167782
          %v1780 = vsel %vm1772, %v1763, %v1779
          %v1781 = vsel %vm1771, %v1778, %v1780
          %v1782 = vsel %vm1770, %v1760, %v1763
          %v1783 = vsel %vm1773, %v1769, 1326507024
          %v1784 = vsel %vm1772, %v1766, %v1783
          %v1785 = vsel %vm1771, %v1782, %v1784
          %v1786 = vshll.u32 %v1746, 8
          %v1787 = vmul.u32.u64.compose %v1786, %v1785
          %v1788 = vextract.low.u32 %v1787
          %v1789 = vextract.high.u32 %v1787
          %v1790 = vmul.u32.u64.compose %v1786, %v1781
          %v1791 = vextract.low.u32 %v1790
          %v1792 = vextract.high.u32 %v1790
          %v1793 = vmul.u32 %v1786, %v1777
          %v1794 = vadd.s32 %v1789, %v1791
          %vm1795 = vc.u32 %v1789, %v1791
          %v1796 = vadd.s32 %v1792, 1
          %v1797 = vsel %vm1795, %v1796, %v1792
          %v1798 = vadd.s32 %v1793, %v1797
          %v1799 = vadd.s32 %v1798, 536870912
          %v1800 = vshrl.u32 %v1799, 30
          %v1801 = vshll.u32 %v1800, 30
          %v1802 = vsub.s32 %v1798, %v1801
          %vm1803 = vcmp.lt.s32.totalorder %v1802, 0
          %v1804 = vsub.s32 0, %v1802
          %v1805 = vsel %vm1803, %v1804, %v1802
          %v1806 = vclz %v1805
          %v1807 = vsub.s32 %v1806, 2
          %vm1808 = vcmp.gt.s32.totalorder 0, %v1807
          %v1809 = vsel %vm1808, 0, %v1807
          %v1810 = vsub.s32 32, %v1809
          %v1811 = vshll.u32 %v1802, %v1809
          %v1812 = vshrl.u32 %v1794, %v1810
          %v1813 = vor.u32 %v1811, %v1812
          %v1814 = vsub.s32 4294967266, %v1809
          %v1815 = vadd.s32 %v1814, 127
          %v1816 = vshll.u32 %v1815, 23
          %v1817 = vor.u32 4788187, %v1816
          %v1818 = vand.u32 2147483647, %v1817
          %v1820 = vcvt.s32.f32 %v1813
          %v1821 = vmul.f32 %v1820, %v1818
          %v1822 = vxor.u32 %v1821, 2147483648
          %v1823 = vsel %vm1740, %v1822, %v1821
          %v1824 = vsub.s32 4, %v1800
          %v1825 = vsel %vm1740, %v1824, %v1800
          %v1826 = vsel %vm1739, %v910, %v1823
          %v1827 = vsel %vm1739, 0, %v1825
          %v1828 = vcosq.f32.pop %v1826
          %v1829 = vsinq.f32.pop %v1826
          %vm1830 = vweird.f32 %v910
          %v1831 = vand.u32 %v1827, 3
          %vm1832 = vcmp.lt.s32.totalorder %v1831, 2
          %vm1833 = vcmp.eq.s32.totalorder %v1831, 0
          %v1834 = vxor.u32 %v1829, 2147483648
          %v1835 = vsel %vm1833, %v1828, %v1834
          %vm1836 = vcmp.eq.s32.totalorder %v1831, 2
          %v1837 = vxor.u32 %v1828, 2147483648
          %v1838 = vsel %vm1836, %v1837, %v1829
          %v1839 = vsel %vm1832, %v1835, %v1838
          %v1840 = vsel %vm1830, nan, %v1839
          %v1841 = vand.u32 2147483647, %v911
          %vm1842 = vcmp.le.f32.partialorder %v1841, 0.7853982
          %vm1843 = vcmp.lt.s32.totalorder %v911, 0
          %v1844 = vand.u32 %v911, 2139095040
          %v1845 = vshrl.u32 %v1844, 23
          %v1846 = vsub.s32 %v1845, 127
          %v1847 = vand.u32 2147483647, %v911
          %v1848 = vand.u32 %v1847, 8388607
          %v1849 = vor.u32 %v1848, 8388608
          %v1850 = vsub.s32 0, %v1849
          %v1851 = vadd.s32 %v1846, 1
          %vm1852 = vcmp.gt.s32.totalorder %v1851, 0
          %v1853 = vsel %vm1852, %v1851, 0
          %v1854 = vshrl.u32 %v1853, 5
          %v1855 = vand.u32 %v1853, 31
          %v1856 = vsub.s32 32, %v1855
          %v1857 = vshrl.u32 683565275, %v1856
          %v1858 = vshll.u32 683565275, %v1855
          %v1859 = vshrl.u32 2475754826, %v1856
          %v1860 = vor.u32 %v1858, %v1859
          %v1861 = vshll.u32 2475754826, %v1855
          %v1862 = vshrl.u32 2131351028, %v1856
          %v1863 = vor.u32 %v1861, %v1862
          %v1864 = vshll.u32 2131351028, %v1855
          %v1865 = vshrl.u32 2102212464, %v1856
          %v1866 = vor.u32 %v1864, %v1865
          %v1867 = vshll.u32 2102212464, %v1855
          %v1868 = vshrl.u32 920167782, %v1856
          %v1869 = vor.u32 %v1867, %v1868
          %v1870 = vshll.u32 920167782, %v1855
          %v1871 = vshrl.u32 1326507024, %v1856
          %v1872 = vor.u32 %v1870, %v1871
          %vm1873 = vcmp.lt.s32.totalorder %v1854, 1
          %vm1874 = vcmp.lt.s32.totalorder %v1854, 2
          %vm1875 = vcmp.lt.s32.totalorder %v1854, 3
          %vm1876 = vcmp.lt.s32.totalorder %v1854, 4
          %v1877 = vsel %vm1873, %v1857, %v1860
          %v1878 = vsel %vm1876, %v1866, 2102212464
          %v1879 = vsel %vm1875, %v1863, %v1878
          %v1880 = vsel %vm1874, %v1877, %v1879
          %v1881 = vsel %vm1873, %v1860, %v1863
          %v1882 = vsel %vm1876, %v1869, 920167782
          %v1883 = vsel %vm1875, %v1866, %v1882
          %v1884 = vsel %vm1874, %v1881, %v1883
          %v1885 = vsel %vm1873, %v1863, %v1866
          %v1886 = vsel %vm1876, %v1872, 1326507024
          %v1887 = vsel %vm1875, %v1869, %v1886
          %v1888 = vsel %vm1874, %v1885, %v1887
          %v1889 = vshll.u32 %v1849, 8
          %v1890 = vmul.u32.u64.compose %v1889, %v1888
          %v1891 = vextract.low.u32 %v1890
          %v1892 = vextract.high.u32 %v1890
          %v1893 = vmul.u32.u64.compose %v1889, %v1884
          %v1894 = vextract.low.u32 %v1893
          %v1895 = vextract.high.u32 %v1893
          %v1896 = vmul.u32 %v1889, %v1880
          %v1897 = vadd.s32 %v1892, %v1894
          %vm1898 = vc.u32 %v1892, %v1894
          %v1899 = vadd.s32 %v1895, 1
          %v1900 = vsel %vm1898, %v1899, %v1895
          %v1901 = vadd.s32 %v1896, %v1900
          %v1902 = vadd.s32 %v1901, 536870912
          %v1903 = vshrl.u32 %v1902, 30
          %v1904 = vshll.u32 %v1903, 30
          %v1905 = vsub.s32 %v1901, %v1904
          %vm1906 = vcmp.lt.s32.totalorder %v1905, 0
          %v1907 = vsub.s32 0, %v1905
          %v1908 = vsel %vm1906, %v1907, %v1905
          %v1909 = vclz %v1908
          %v1910 = vsub.s32 %v1909, 2
          %vm1911 = vcmp.gt.s32.totalorder 0, %v1910
          %v1912 = vsel %vm1911, 0, %v1910
          %v1913 = vsub.s32 32, %v1912
          %v1914 = vshll.u32 %v1905, %v1912
          %v1915 = vshrl.u32 %v1897, %v1913
          %v1916 = vor.u32 %v1914, %v1915
          %v1917 = vsub.s32 4294967266, %v1912
          %v1918 = vadd.s32 %v1917, 127
          %v1919 = vshll.u32 %v1918, 23
          %v1920 = vor.u32 4788187, %v1919
          %v1921 = vand.u32 2147483647, %v1920
          %v1923 = vcvt.s32.f32 %v1916
          %v1924 = vmul.f32 %v1923, %v1921
          %v1925 = vxor.u32 %v1924, 2147483648
          %v1926 = vsel %vm1843, %v1925, %v1924
          %v1927 = vsub.s32 4, %v1903
          %v1928 = vsel %vm1843, %v1927, %v1903
          %v1929 = vsel %vm1842, %v911, %v1926
          %v1930 = vsel %vm1842, 0, %v1928
          %v1931 = vcosq.f32.pop %v1929
          %v1932 = vsinq.f32.pop %v1929
          %vm1933 = vweird.f32 %v911
          %v1934 = vand.u32 %v1930, 3
          %vm1935 = vcmp.lt.s32.totalorder %v1934, 2
          %vm1936 = vcmp.eq.s32.totalorder %v1934, 0
          %v1937 = vxor.u32 %v1932, 2147483648
          %v1938 = vsel %vm1936, %v1931, %v1937
          %vm1939 = vcmp.eq.s32.totalorder %v1934, 2
          %v1940 = vxor.u32 %v1931, 2147483648
          %v1941 = vsel %vm1939, %v1940, %v1932
          %v1942 = vsel %vm1935, %v1938, %v1941
          %v1943 = vsel %vm1933, nan, %v1942
          %v1944 = vand.u32 2147483647, %v912
          %vm1945 = vcmp.le.f32.partialorder %v1944, 0.7853982
          %vm1946 = vcmp.lt.s32.totalorder %v912, 0
          %v1947 = vand.u32 %v912, 2139095040
          %v1948 = vshrl.u32 %v1947, 23
          %v1949 = vsub.s32 %v1948, 127
          %v1950 = vand.u32 2147483647, %v912
          %v1951 = vand.u32 %v1950, 8388607
          %v1952 = vor.u32 %v1951, 8388608
          %v1953 = vsub.s32 0, %v1952
          %v1954 = vadd.s32 %v1949, 1
          %vm1955 = vcmp.gt.s32.totalorder %v1954, 0
          %v1956 = vsel %vm1955, %v1954, 0
          %v1957 = vshrl.u32 %v1956, 5
          %v1958 = vand.u32 %v1956, 31
          %v1959 = vsub.s32 32, %v1958
          %v1960 = vshrl.u32 683565275, %v1959
          %v1961 = vshll.u32 683565275, %v1958
          %v1962 = vshrl.u32 2475754826, %v1959
          %v1963 = vor.u32 %v1961, %v1962
          %v1964 = vshll.u32 2475754826, %v1958
          %v1965 = vshrl.u32 2131351028, %v1959
          %v1966 = vor.u32 %v1964, %v1965
          %v1967 = vshll.u32 2131351028, %v1958
          %v1968 = vshrl.u32 2102212464, %v1959
          %v1969 = vor.u32 %v1967, %v1968
          %v1970 = vshll.u32 2102212464, %v1958
          %v1971 = vshrl.u32 920167782, %v1959
          %v1972 = vor.u32 %v1970, %v1971
          %v1973 = vshll.u32 920167782, %v1958
          %v1974 = vshrl.u32 1326507024, %v1959
          %v1975 = vor.u32 %v1973, %v1974
          %vm1976 = vcmp.lt.s32.totalorder %v1957, 1
          %vm1977 = vcmp.lt.s32.totalorder %v1957, 2
          %vm1978 = vcmp.lt.s32.totalorder %v1957, 3
          %vm1979 = vcmp.lt.s32.totalorder %v1957, 4
          %v1980 = vsel %vm1976, %v1960, %v1963
          %v1981 = vsel %vm1979, %v1969, 2102212464
          %v1982 = vsel %vm1978, %v1966, %v1981
          %v1983 = vsel %vm1977, %v1980, %v1982
          %v1984 = vsel %vm1976, %v1963, %v1966
          %v1985 = vsel %vm1979, %v1972, 920167782
          %v1986 = vsel %vm1978, %v1969, %v1985
          %v1987 = vsel %vm1977, %v1984, %v1986
          %v1988 = vsel %vm1976, %v1966, %v1969
          %v1989 = vsel %vm1979, %v1975, 1326507024
          %v1990 = vsel %vm1978, %v1972, %v1989
          %v1991 = vsel %vm1977, %v1988, %v1990
          %v1992 = vshll.u32 %v1952, 8
          %v1993 = vmul.u32.u64.compose %v1992, %v1991
          %v1994 = vextract.low.u32 %v1993
          %v1995 = vextract.high.u32 %v1993
          %v1996 = vmul.u32.u64.compose %v1992, %v1987
          %v1997 = vextract.low.u32 %v1996
          %v1998 = vextract.high.u32 %v1996
          %v1999 = vmul.u32 %v1992, %v1983
          %v2000 = vadd.s32 %v1995, %v1997
          %vm2001 = vc.u32 %v1995, %v1997
          %v2002 = vadd.s32 %v1998, 1
          %v2003 = vsel %vm2001, %v2002, %v1998
          %v2004 = vadd.s32 %v1999, %v2003
          %v2005 = vadd.s32 %v2004, 536870912
          %v2006 = vshrl.u32 %v2005, 30
          %v2007 = vshll.u32 %v2006, 30
          %v2008 = vsub.s32 %v2004, %v2007
          %vm2009 = vcmp.lt.s32.totalorder %v2008, 0
          %v2010 = vsub.s32 0, %v2008
          %v2011 = vsel %vm2009, %v2010, %v2008
          %v2012 = vclz %v2011
          %v2013 = vsub.s32 %v2012, 2
          %vm2014 = vcmp.gt.s32.totalorder 0, %v2013
          %v2015 = vsel %vm2014, 0, %v2013
          %v2016 = vsub.s32 32, %v2015
          %v2017 = vshll.u32 %v2008, %v2015
          %v2018 = vshrl.u32 %v2000, %v2016
          %v2019 = vor.u32 %v2017, %v2018
          %v2020 = vsub.s32 4294967266, %v2015
          %v2021 = vadd.s32 %v2020, 127
          %v2022 = vshll.u32 %v2021, 23
          %v2023 = vor.u32 4788187, %v2022
          %v2024 = vand.u32 2147483647, %v2023
          %v2026 = vcvt.s32.f32 %v2019
          %v2027 = vmul.f32 %v2026, %v2024
          %v2028 = vxor.u32 %v2027, 2147483648
          %v2029 = vsel %vm1946, %v2028, %v2027
          %v2030 = vsub.s32 4, %v2006
          %v2031 = vsel %vm1946, %v2030, %v2006
          %v2032 = vsel %vm1945, %v912, %v2029
          %v2033 = vsel %vm1945, 0, %v2031
          %v2034 = vcosq.f32.pop %v2032
          %v2035 = vsinq.f32.pop %v2032
          %vm2036 = vweird.f32 %v912
          %v2037 = vand.u32 %v2033, 3
          %vm2038 = vcmp.lt.s32.totalorder %v2037, 2
          %vm2039 = vcmp.eq.s32.totalorder %v2037, 0
          %v2040 = vxor.u32 %v2035, 2147483648
          %v2041 = vsel %vm2039, %v2034, %v2040
          %vm2042 = vcmp.eq.s32.totalorder %v2037, 2
          %v2043 = vxor.u32 %v2034, 2147483648
          %v2044 = vsel %vm2042, %v2043, %v2035
          %v2045 = vsel %vm2038, %v2041, %v2044
          %v2046 = vsel %vm2036, nan, %v2045
          %v2047 = vand.u32 2147483647, %v913
          %vm2048 = vcmp.le.f32.partialorder %v2047, 0.7853982
          %vm2049 = vcmp.lt.s32.totalorder %v913, 0
          %v2050 = vand.u32 %v913, 2139095040
          %v2051 = vshrl.u32 %v2050, 23
          %v2052 = vsub.s32 %v2051, 127
          %v2053 = vand.u32 2147483647, %v913
          %v2054 = vand.u32 %v2053, 8388607
          %v2055 = vor.u32 %v2054, 8388608
          %v2056 = vsub.s32 0, %v2055
          %v2057 = vadd.s32 %v2052, 1
          %vm2058 = vcmp.gt.s32.totalorder %v2057, 0
          %v2059 = vsel %vm2058, %v2057, 0
          %v2060 = vshrl.u32 %v2059, 5
          %v2061 = vand.u32 %v2059, 31
          %v2062 = vsub.s32 32, %v2061
          %v2063 = vshrl.u32 683565275, %v2062
          %v2064 = vshll.u32 683565275, %v2061
          %v2065 = vshrl.u32 2475754826, %v2062
          %v2066 = vor.u32 %v2064, %v2065
          %v2067 = vshll.u32 2475754826, %v2061
          %v2068 = vshrl.u32 2131351028, %v2062
          %v2069 = vor.u32 %v2067, %v2068
          %v2070 = vshll.u32 2131351028, %v2061
          %v2071 = vshrl.u32 2102212464, %v2062
          %v2072 = vor.u32 %v2070, %v2071
          %v2073 = vshll.u32 2102212464, %v2061
          %v2074 = vshrl.u32 920167782, %v2062
          %v2075 = vor.u32 %v2073, %v2074
          %v2076 = vshll.u32 920167782, %v2061
          %v2077 = vshrl.u32 1326507024, %v2062
          %v2078 = vor.u32 %v2076, %v2077
          %vm2079 = vcmp.lt.s32.totalorder %v2060, 1
          %vm2080 = vcmp.lt.s32.totalorder %v2060, 2
          %vm2081 = vcmp.lt.s32.totalorder %v2060, 3
          %vm2082 = vcmp.lt.s32.totalorder %v2060, 4
          %v2083 = vsel %vm2079, %v2063, %v2066
          %v2084 = vsel %vm2082, %v2072, 2102212464
          %v2085 = vsel %vm2081, %v2069, %v2084
          %v2086 = vsel %vm2080, %v2083, %v2085
          %v2087 = vsel %vm2079, %v2066, %v2069
          %v2088 = vsel %vm2082, %v2075, 920167782
          %v2089 = vsel %vm2081, %v2072, %v2088
          %v2090 = vsel %vm2080, %v2087, %v2089
          %v2091 = vsel %vm2079, %v2069, %v2072
          %v2092 = vsel %vm2082, %v2078, 1326507024
          %v2093 = vsel %vm2081, %v2075, %v2092
          %v2094 = vsel %vm2080, %v2091, %v2093
          %v2095 = vshll.u32 %v2055, 8
          %v2096 = vmul.u32.u64.compose %v2095, %v2094
          %v2097 = vextract.low.u32 %v2096
          %v2098 = vextract.high.u32 %v2096
          %v2099 = vmul.u32.u64.compose %v2095, %v2090
          %v2100 = vextract.low.u32 %v2099
          %v2101 = vextract.high.u32 %v2099
          %v2102 = vmul.u32 %v2095, %v2086
          %v2103 = vadd.s32 %v2098, %v2100
          %vm2104 = vc.u32 %v2098, %v2100
          %v2105 = vadd.s32 %v2101, 1
          %v2106 = vsel %vm2104, %v2105, %v2101
          %v2107 = vadd.s32 %v2102, %v2106
          %v2108 = vadd.s32 %v2107, 536870912
          %v2109 = vshrl.u32 %v2108, 30
          %v2110 = vshll.u32 %v2109, 30
          %v2111 = vsub.s32 %v2107, %v2110
          %vm2112 = vcmp.lt.s32.totalorder %v2111, 0
          %v2113 = vsub.s32 0, %v2111
          %v2114 = vsel %vm2112, %v2113, %v2111
          %v2115 = vclz %v2114
          %v2116 = vsub.s32 %v2115, 2
          %vm2117 = vcmp.gt.s32.totalorder 0, %v2116
          %v2118 = vsel %vm2117, 0, %v2116
          %v2119 = vsub.s32 32, %v2118
          %v2120 = vshll.u32 %v2111, %v2118
          %v2121 = vshrl.u32 %v2103, %v2119
          %v2122 = vor.u32 %v2120, %v2121
          %v2123 = vsub.s32 4294967266, %v2118
          %v2124 = vadd.s32 %v2123, 127
          %v2125 = vshll.u32 %v2124, 23
          %v2126 = vor.u32 4788187, %v2125
          %v2127 = vand.u32 2147483647, %v2126
          %v2129 = vcvt.s32.f32 %v2122
          %v2130 = vmul.f32 %v2129, %v2127
          %v2131 = vxor.u32 %v2130, 2147483648
          %v2132 = vsel %vm2049, %v2131, %v2130
          %v2133 = vsub.s32 4, %v2109
          %v2134 = vsel %vm2049, %v2133, %v2109
          %v2135 = vsel %vm2048, %v913, %v2132
          %v2136 = vsel %vm2048, 0, %v2134
          %v2137 = vcosq.f32.pop %v2135
          %v2138 = vsinq.f32.pop %v2135
          %vm2139 = vweird.f32 %v913
          %v2140 = vand.u32 %v2136, 3
          %vm2141 = vcmp.lt.s32.totalorder %v2140, 2
          %vm2142 = vcmp.eq.s32.totalorder %v2140, 0
          %v2143 = vxor.u32 %v2138, 2147483648
          %v2144 = vsel %vm2142, %v2137, %v2143
          %vm2145 = vcmp.eq.s32.totalorder %v2140, 2
          %v2146 = vxor.u32 %v2137, 2147483648
          %v2147 = vsel %vm2145, %v2146, %v2138
          %v2148 = vsel %vm2141, %v2144, %v2147
          %v2149 = vsel %vm2139, nan, %v2148
          %v2150 = vmul.f32 %v1016, 0.5
          %v2151 = vmul.f32 %v1119, 0.5
          %v2152 = vmul.f32 %v1222, 0.5
          %v2153 = vmul.f32 %v1325, 0.5
          %v2154 = vmul.f32 %v1428, 0.5
          %v2155 = vmul.f32 %v1531, 0.5
          %v2156 = vmul.f32 %v1634, 0.5
          %v2157 = vmul.f32 %v1737, 0.5
          %v2158 = vmul.f32 %v1840, 0.5
          %v2159 = vmul.f32 %v1943, 0.5
          %v2160 = vmul.f32 %v2046, 0.5
          %v2161 = vmul.f32 %v2149, 0.5
          %v2162 = vadd.f32 %v2150, 0.5
          %v2163 = vadd.f32 %v2151, 0.5
          %v2164 = vadd.f32 %v2152, 0.5
          %v2165 = vadd.f32 %v2153, 0.5
          %v2166 = vadd.f32 %v2154, 0.5
          %v2167 = vadd.f32 %v2155, 0.5
          %v2168 = vadd.f32 %v2156, 0.5
          %v2169 = vadd.f32 %v2157, 0.5
          %v2170 = vadd.f32 %v2158, 0.5
          %v2171 = vadd.f32 %v2159, 0.5
          %v2172 = vadd.f32 %v2160, 0.5
          %v2173 = vadd.f32 %v2161, 0.5
          %v2174 = vmul.f32 %v864, %v2162
          %v2175 = vmul.f32 %v865, %v2163
          %v2176 = vmul.f32 %v866, %v2164
          %v2177 = vmul.f32 %v867, %v2165
          %v2178 = vmul.f32 %v868, %v2166
          %v2179 = vmul.f32 %v869, %v2167
          %v2180 = vmul.f32 %v870, %v2168
          %v2181 = vmul.f32 %v871, %v2169
          %v2182 = vmul.f32 %v872, %v2170
          %v2183 = vmul.f32 %v873, %v2171
          %v2184 = vmul.f32 %v874, %v2172
          %v2185 = vmul.f32 %v875, %v2173
          %2186 = vst [vmem:[%s337] sm:$0xff] %v2174
          %2187 = vst [vmem:[%s337 + $0x8] sm:$0xff] %v2175
          %2188 = vst [vmem:[%s337 + $0x10] sm:$0xff] %v2176
          %2189 = vst [vmem:[%s337 + $0x18] sm:$0xff] %v2177
          %2190 = vst [vmem:[%s337 + $0x20] sm:$0xff] %v2178
          %2191 = vst [vmem:[%s337 + $0x28] sm:$0xff] %v2179
          %2192 = vst [vmem:[%s337 + $0x30] sm:$0xff] %v2180
          %2193 = vst [vmem:[%s337 + $0x38] sm:$0xff] %v2181
          %2194 = vst [vmem:[%s337 + $0x40] sm:$0xff] %v2182
          %2195 = vst [vmem:[%s337 + $0x48] sm:$0xff] %v2183
          %2196 = vst [vmem:[%s337 + $0x50] sm:$0xff] %v2184
          %2197 = vst [vmem:[%s337 + $0x58] sm:$0xff] %v2185
        $region60: #{tpu_custom_call.1} parent=39 // pred_fallthru
          _
        %s2198 = sand.u32 %s165, 1
        %s2199 = scalar_lea.sflag [#allocation5], %s2198
        %s2200 = sand.u32 %s165, 1
        %s2201 = smul.addr %s2200, 96
        %s2202 = scalar_lea.vmem [#allocation9], %s2201
        // Predicated region
        $region61: #{tpu_custom_call.1} parent=39 // pred_check
          %p2203 = pneg %p175
        $region62: #{tpu_custom_call.1} parent=39 // pred_check_branch
          %2205 = sbr.rel (%p2203) target = $region64
        $region63: #{tpu_custom_call.1} parent=39 // pred_region
          %s2206 = smul.u32 12, %s29
          %s2207 = ssub.s32 32, %s2206
          %p2208 = scmp.lt.s32.totalorder %s2207, 12
          %s2209 = scalar_select %p2208, %s2207, 12
          %s2210 = smul.u32 128, %s2209
          %s2212 = ssub.s32 1536, %s2210
          %2213 = vsyncadd %s2199, %s2212
          %p2214 = scmp.ne.s32.totalorder 0, %s2210
          %s2215 = smul.addr %s2206, 128
          %s2216 = scalar_lea.hbm %s5, %s2215
          %s2217 = smul.u32 8, %s2209
          %s2218 = sshll.u32 %s2202, 4
          %s2219 = int_to_ptr.vmem [resolvable:$true] %s2218
          %s2220 = sshll.u32 %s2217, 4
          %2224 = dma.vmem_to_hbm [thread:$0]  (%p2214), %s2219, %s2220, %s2216, %s2199, 128, 128, 8
        $region64: #{tpu_custom_call.1} parent=39 // pred_fallthru
          _
      $region40: #{tpu_custom_call.1} parent=5 // pred_fallthru
        _
      %p2225 = scmp.le.s32.totalorder 2, %s20
      // Predicated region
      $region65: #{tpu_custom_call.1} parent=5 // pred_check
        %p2226 = pneg %p2225
      $region66: #{tpu_custom_call.1} parent=5 // pred_check_branch
        %2228 = sbr.rel (%p2226) target = $region68
      $region67: #{tpu_custom_call.1} parent=5 // pred_region
        %s2229 = ssub.s32 %s20, 2
        // Predicated region
        $region69: #{tpu_custom_call.1} parent=67 // pred_check
          %p2230 = pneg %p181
        $region70: #{tpu_custom_call.1} parent=67 // pred_check_branch
          %2232 = sbr.rel (%p2230) target = $region72
        $region71: #{tpu_custom_call.1} parent=67 // pred_region
          %s2233 = sand.u32 %s166, 1
          %s2234 = scalar_lea.sflag [#allocation5], %s2233
          %s2235 = sand.u32 %s166, 1
          %s2236 = smul.addr %s2235, 96
          %s2237 = scalar_lea.vmem [#allocation9], %s2236
          %2238 = dma.done %s2234, 1536
        $region72: #{tpu_custom_call.1} parent=67 // pred_fallthru
          _
      $region68: #{tpu_custom_call.1} parent=5 // pred_fallthru
        _
    $region6: #{tpu_custom_call.1} parent=1 // loop_footer
      %s24 = sadd.s32 1, %s20
    $region7: #{tpu_custom_call.1} parent=1 // loop_footer_branch
      %19 = sbr.rel target = $region3
    $region8: #{tpu_custom_call.1} parent=1 // loop_exit
      _
    %2239 = vsyncpa [#allocation4], 1
    %s2240 = scalar_lea.sflag [#allocation4], 1
    %2241 = vsyncpa %s2240, 1
    %2242 = vsyncpa [#allocation7], 1
    %s2243 = scalar_lea.sflag [#allocation7], 1
    %2244 = vsyncpa %s2243, 1
    %2245 = vsyncpa [#allocation5], 1
    %s2246 = scalar_lea.sflag [#allocation5], 1
    %2247 = vsyncpa %s2246, 1

</llo_original>
